<compile_context>
chip_gen: v7x
topology: tpu7x:2x2x1
jax: 0.10.0
libtpu: 0.0.40
codegen_flags: <defaults>
</compile_context>

<pallas_src>
import functools

import jax
import jax.numpy as jnp
from jax import lax
from jax.experimental import pallas as pl
from jax.experimental.pallas import tpu as pltpu


# ---------------------------------------------------------------------------
# In-kernel math helpers
# ---------------------------------------------------------------------------
def _gelu_tanh(x):
    # tanh-approximation GELU (== PyTorch F.gelu(approximate='tanh'), <=~1e-3 abs from
    # the erf-exact default).  Chosen so the transcendental runs on the EUP slot instead
    # of a ~14-op f32 erf polynomial on the VALU.
    # TODO(synk): switch back to the erf polynomial if exact parity with F.gelu is needed.
    c = 0.7978845608028654  # sqrt(2/pi)
    return 0.5 * x * (1.0 + jnp.tanh(c * (x + 0.044715 * x * x * x)))


def _layernorm_masked(x, gamma, beta, mask, inv_d, eps=1e-5):
    # LayerNorm over the first `d_model` lanes of a 128-padded tensor.  Pad columns of x
    # are zero by construction, gamma/beta are zero-padded, so pad lanes stay zero.
    mu = jnp.sum(x, axis=-1, keepdims=True) * inv_d
    xc = (x - mu) * mask
    var = jnp.sum(xc * xc, axis=-1, keepdims=True) * inv_d
    return xc * lax.rsqrt(var + eps) * gamma + beta


# ---------------------------------------------------------------------------
# Pallas kernel: one (batch, query-tile) pair per grid step
# ---------------------------------------------------------------------------
def encoder_layer_kernel(
    xq_ref,                              # (TL, Dp) f32 query tile (pad lanes zero)
    k_ref, v_ref,                        # (H, L, dk) / (H, L, dv) bf16, precomputed
    wq_ref, wo_ref,                      # (H, Dp, dk) bf16 (scale folded) / (H, dv, Dp) bf16
    ga_ref, ba_ref,                      # attention-block LayerNorm gamma/beta (1, Dp)
    w1_ref, b1_ref, w2_ref, b2_ref,      # conv1 / conv2 (k=1 -> matmul), bf16 W, f32 bias
    g2_ref, be2_ref,                     # final LayerNorm gamma/beta (1, Dp)
    out_ref,                             # (TL, Dp) f32
    acc_ref,                             # VMEM scratch (TL, Dp) f32 accumulator
    *, n_heads, d_model,
):
    f32 = jnp.float32
    bf16 = jnp.bfloat16
    dp = out_ref.shape[-1]

    xq = xq_ref[...]                     # residual source (f32)
    xq_b = xq.astype(bf16)

    # Lane mask for the real (unpadded) d_model columns.
    lane = lax.broadcasted_iota(jnp.int32, (1, dp), 1)
    dmask = (lane < d_model).astype(f32)
    inv_d = 1.0 / float(d_model)

    acc_ref[...] = jnp.zeros_like(acc_ref)

    def head_body(h, carry):
        # All per-head accesses are leading-dim indexes -> lane-dense, no relayout copies.
        qh = jnp.dot(xq_b, wq_ref[h], preferred_element_type=f32).astype(bf16)  # (TL, dk)
        kh = k_ref[h]                                                           # (L, dk)
        vh = v_ref[h]                                                           # (L, dv)
        # 1/sqrt(dk) already folded into Wq on the host.
        s = lax.dot_general(qh, kh, (((1,), (1,)), ((), ())),
                            preferred_element_type=f32)                         # (TL, L)
        s = s - jnp.max(s, axis=-1, keepdims=True)
        p = jnp.exp(s)
        p = p * pl.reciprocal(jnp.sum(p, axis=-1, keepdims=True), approx=True)
        pv = jnp.dot(p.astype(bf16), vh, preferred_element_type=f32)            # (TL, dv)
        # Fold head context straight into the output projection accumulator.
        acc_ref[...] += jnp.dot(pv.astype(bf16), wo_ref[h],
                                preferred_element_type=f32)                     # (TL, Dp)
        return carry

    lax.fori_loop(0, n_heads, head_body, 0)

    # Attention block epilogue: residual + LayerNorm (dropout = identity in eval).
    y1 = _layernorm_masked(xq + acc_ref[...], ga_ref[...], ba_ref[...], dmask, inv_d)

    # FFN: conv1(k=1) -> GELU -> conv2(k=1), residual + LayerNorm.
    h1 = jnp.dot(y1.astype(bf16), w1_ref[...], preferred_element_type=f32) + b1_ref[...]
    h1 = _gelu_tanh(h1)
    h2 = jnp.dot(h1.astype(bf16), w2_ref[...], preferred_element_type=f32) + b2_ref[...]
    out_ref[...] = _layernorm_masked(y1 + h2, g2_ref[...], be2_ref[...], dmask, inv_d)


# ---------------------------------------------------------------------------
# Wrapper
# ---------------------------------------------------------------------------
def _round_up(n, m):
    return ((n + m - 1) // m) * m


def _vmem_capacity_bytes():
    try:
        return int(pltpu.get_tpu_info().vmem_capacity_bytes)
    except Exception:
        return 128 * 1024 * 1024


def _pick_tile_l(L):
    # v7x has 64 MiB VMEM -> cap the query tile at 256; v5e/v6e (128 MiB) use 512.
    cap = 256 if _vmem_capacity_bytes() <= 64 * 1024 * 1024 else 512
    for t in (cap, 256, 128):
        if t <= L and L % t == 0:
            return t
    return L


def encoder_layer(x, params, *, n_heads, d_k, d_v):
    B, L, D = x.shape
    d_ff = params["w1t"].shape[1]
    Dp = _round_up(D, 128)               # lane-dense model dim
    Fp = _round_up(d_ff, 128)            # lane-dense hidden dim
    tl = _pick_tile_l(L)
    n_lt = L // tl

    bf16 = jnp.bfloat16
    f32 = jnp.float32
    H = n_heads
    scale = 1.0 / (float(d_k) ** 0.5)

    # ---- host-side precompute (plain XLA; hoisted out of the kernel) -------------
    x_p = jnp.pad(x, ((0, 0), (0, 0), (0, Dp - D)))                       # zero-padded lanes

    # K/V projections once per batch, head-major, bf16 (no per-query-tile recompute).
    wk3 = params["wk"].reshape(D, H, d_k)
    wv3 = params["wv"].reshape(D, H, d_v)
    k_heads = jnp.einsum("bld,dhk->bhlk", x, wk3).astype(bf16)            # (B, H, L, dk)
    v_heads = jnp.einsum("bld,dhk->bhlk", x, wv3).astype(bf16)            # (B, H, L, dv)

    # Head-major weights; softmax scale folded into Wq; zero-pad the d_model axes.
    wq_hm = jnp.pad((params["wq"] * scale).reshape(D, H, d_k).transpose(1, 0, 2),
                    ((0, 0), (0, Dp - D), (0, 0))).astype(bf16)           # (H, Dp, dk)
    wo_hm = jnp.pad(params["wo"].reshape(H, d_v, D),
                    ((0, 0), (0, 0), (0, Dp - D))).astype(bf16)           # (H, dv, Dp)
    w1p = jnp.pad(params["w1t"], ((0, Dp - D), (0, Fp - d_ff))).astype(bf16)
    b1p = jnp.pad(params["b1"], ((0, 0), (0, Fp - d_ff))).astype(f32)
    w2p = jnp.pad(params["w2t"], ((0, Fp - d_ff), (0, Dp - D))).astype(bf16)
    b2p = jnp.pad(params["b2"], ((0, 0), (0, Dp - D))).astype(f32)
    ga = jnp.pad(params["gamma_attn"], ((0, 0), (0, Dp - D))).astype(f32)
    ba = jnp.pad(params["beta_attn"], ((0, 0), (0, Dp - D))).astype(f32)
    g2 = jnp.pad(params["gamma_ffn"], ((0, 0), (0, Dp - D))).astype(f32)
    be2 = jnp.pad(params["beta_ffn"], ((0, 0), (0, Dp - D))).astype(f32)

    kernel = functools.partial(encoder_layer_kernel, n_heads=H, d_model=D)

    def build(single_buffer):
        def resident(shape):
            # Constant-index (weight/param) blocks; single-buffer them to reclaim VMEM.
            zeros = (0,) * len(shape)
            if single_buffer:
                return pl.BlockSpec(shape, lambda b, l: zeros,
                                    pipeline_mode=pl.Buffered(1))
            return pl.BlockSpec(shape, lambda b, l: zeros)

        in_specs = [
            pl.BlockSpec((None, tl, Dp), lambda b, l: (b, l, 0)),         # x query tile (f32)
            pl.BlockSpec((None, H, L, d_k), lambda b, l: (b, 0, 0, 0)),   # K heads (bf16)
            pl.BlockSpec((None, H, L, d_v), lambda b, l: (b, 0, 0, 0)),   # V heads (bf16)
            resident((H, Dp, d_k)),                                       # Wq * scale (bf16)
            resident((H, d_v, Dp)),                                       # Wo (bf16)
            resident((1, Dp)), resident((1, Dp)),                         # attn LN gamma/beta
            resident((Dp, Fp)), resident((1, Fp)),                        # conv1 W^T, bias
            resident((Fp, Dp)), resident((1, Dp)),                        # conv2 W^T, bias
            resident((1, Dp)), resident((1, Dp)),                         # final LN gamma/beta
        ]
        return pl.pallas_call(
            kernel,
            out_shape=jax.ShapeDtypeStruct((B, L, Dp), f32),
            grid=(B, n_lt),
            in_specs=in_specs,
            out_specs=pl.BlockSpec((None, tl, Dp), lambda b, l: (b, l, 0)),
            scratch_shapes=[pltpu.VMEM((tl, Dp), f32)],
            compiler_params=pltpu.CompilerParams(
                dimension_semantics=("parallel", "parallel"),
                vmem_limit_bytes=48 * 1024 * 1024,
            ),
        )

    operands = (x_p, k_heads, v_heads, wq_hm, wo_hm, ga, ba,
                w1p, b1p, w2p, b2p, g2, be2)
    try:
        out_p = build(single_buffer=True)(*operands)
    except Exception:
        # TODO(synk): drop this fallback once pl.Buffered(1) single-buffering is
        # confirmed supported on the deployed jax version.
        out_p = build(single_buffer=False)(*operands)

    return out_p[..., :D] if Dp != D else out_p


# ---------------------------------------------------------------------------
# Pure-JAX reference (same assumed FullAttention semantics) for a sanity check
# ---------------------------------------------------------------------------
def encoder_layer_reference(x, params, *, n_heads, d_k, d_v):
    B, L, D = x.shape
    H = n_heads
    scale = 1.0 / (float(d_k) ** 0.5)
    q = (x @ params["wq"]).reshape(B, L, H, d_k)
    k = (x @ params["wk"]).reshape(B, L, H, d_k)
    v = (x @ params["wv"]).reshape(B, L, H, d_v)
    s = jnp.einsum("blhk,bmhk->bhlm", q, k) * scale
    p = jax.nn.softmax(s, axis=-1)
    ctx = jnp.einsum("bhlm,bmhv->blhv", p, v).reshape(B, L, H * d_v)
    attn = ctx @ params["wo"]

    def ln(z, g, b, eps=1e-5):
        mu = z.mean(-1, keepdims=True)
        var = ((z - mu) ** 2).mean(-1, keepdims=True)
        return (z - mu) / jnp.sqrt(var + eps) * g + b

    y1 = ln(x + attn, params["gamma_attn"], params["beta_attn"])
    h1 = jax.nn.gelu(y1 @ params["w1t"] + params["b1"], approximate=True)
    h2 = h1 @ params["w2t"] + params["b2"]
    return ln(y1 + h2, params["gamma_ffn"], params["beta_ffn"])


# ---------------------------------------------------------------------------
# Deterministic parameter construction + smoke test
# ---------------------------------------------------------------------------
def make_params(key, d_model, d_ff, n_heads, d_k, d_v):
    ks = jax.random.split(key, 8)
    s = 0.05
    return {
        "wq": s * jax.random.normal(ks[0], (d_model, n_heads * d_k), jnp.float32),
        "wk": s * jax.random.normal(ks[1], (d_model, n_heads * d_k), jnp.float32),
        "wv": s * jax.random.normal(ks[2], (d_model, n_heads * d_v), jnp.float32),
        "wo": s * jax.random.normal(ks[3], (n_heads * d_v, d_model), jnp.float32),
        "gamma_attn": jnp.ones((1, d_model), jnp.float32),
        "beta_attn": jnp.zeros((1, d_model), jnp.float32),
        # conv1: torch weight (d_ff, d_model, 1) -> stored transposed (d_model, d_ff)
        "w1t": s * jax.random.normal(ks[4], (d_model, d_ff), jnp.float32),
        "b1": s * jax.random.normal(ks[5], (1, d_ff), jnp.float32),
        # conv2: torch weight (d_model, d_ff, 1) -> stored transposed (d_ff, d_model)
        "w2t": s * jax.random.normal(ks[6], (d_ff, d_model), jnp.float32),
        "b2": s * jax.random.normal(ks[7], (1, d_model), jnp.float32),
        "gamma_ffn": jnp.ones((1, d_model), jnp.float32),
        "beta_ffn": jnp.zeros((1, d_model), jnp.float32),
    }


if __name__ == "__main__":
    B, L = 2, 8
    d_model, d_ff, n_heads = 32, 64, 4
    d_k = d_v = d_model // n_heads

    key = jax.random.PRNGKey(0)
    kx, kp = jax.random.split(key)
    x = jax.random.normal(kx, (B, L, d_model), jnp.float32)
    params = make_params(kp, d_model, d_ff, n_heads, d_k, d_v)

    out = encoder_layer(x, params, n_heads=n_heads, d_k=d_k, d_v=d_v)
    out = jax.block_until_ready(out)
    assert out.shape == (B, L, d_model) and out.dtype == jnp.float32
    assert bool(jnp.all(jnp.isfinite(out)))

    # Loose parity check vs f32 reference (kernel uses bf16 matmuls + approx reciprocal).
    ref = encoder_layer_reference(x, params, n_heads=n_heads, d_k=d_k, d_v=d_v)
    max_err = float(jnp.max(jnp.abs(out - ref)))
    assert max_err < 0.1, f"kernel/reference mismatch: {max_err}"

    print("KERNEL_OK")
</pallas_src>

<mosaic_0001>
module attributes {stable_mosaic.version = 11 : i64} {
  func.func @encoder_layer_kernel(%arg0: i32, %arg1: i32, %arg2: memref<1x8x128xf32, #tpu.memory_space<vmem>>, %arg3: memref<1x4x8x8xbf16, #tpu.memory_space<vmem>>, %arg4: memref<1x4x8x8xbf16, #tpu.memory_space<vmem>>, %arg5: memref<4x128x8xbf16, #tpu.memory_space<vmem>>, %arg6: memref<4x8x128xbf16, #tpu.memory_space<vmem>>, %arg7: memref<1x128xf32, #tpu.memory_space<vmem>>, %arg8: memref<1x128xf32, #tpu.memory_space<vmem>>, %arg9: memref<128x128xbf16, #tpu.memory_space<vmem>>, %arg10: memref<1x128xf32, #tpu.memory_space<vmem>>, %arg11: memref<128x128xbf16, #tpu.memory_space<vmem>>, %arg12: memref<1x128xf32, #tpu.memory_space<vmem>>, %arg13: memref<1x128xf32, #tpu.memory_space<vmem>>, %arg14: memref<1x128xf32, #tpu.memory_space<vmem>>, %arg15: memref<1x8x128xf32, #tpu.memory_space<vmem>>, %arg16: memref<8x128xf32, #tpu.memory_space<vmem>>) attributes {dimension_semantics = [#tpu.dimension_semantics<parallel>, #tpu.dimension_semantics<parallel>], iteration_bounds = array<i64: 2, 1>, scalar_prefetch = 0 : i64, scratch_operands = 1 : i64, tpu.core_type = #tpu.core_type<tc>, window_params = [{transform_indices = @transform_0, window_bounds = array<i64: 1, 8, 128>}, {transform_indices = @transform_1, window_bounds = array<i64: 1, 4, 8, 8>}, {transform_indices = @transform_2, window_bounds = array<i64: 1, 4, 8, 8>}, {pipeline_mode = #tpu.pipeline_mode<synchronous>, transform_indices = @transform_3, window_bounds = array<i64: 4, 128, 8>}, {pipeline_mode = #tpu.pipeline_mode<synchronous>, transform_indices = @transform_4, window_bounds = array<i64: 4, 8, 128>}, {pipeline_mode = #tpu.pipeline_mode<synchronous>, transform_indices = @transform_5, window_bounds = array<i64: 1, 128>}, {pipeline_mode = #tpu.pipeline_mode<synchronous>, transform_indices = @transform_6, window_bounds = array<i64: 1, 128>}, {pipeline_mode = #tpu.pipeline_mode<synchronous>, transform_indices = @transform_7, window_bounds = array<i64: 128, 128>}, {pipeline_mode = #tpu.pipeline_mode<synchronous>, transform_indices = @transform_8, window_bounds = array<i64: 1, 128>}, {pipeline_mode = #tpu.pipeline_mode<synchronous>, transform_indices = @transform_9, window_bounds = array<i64: 128, 128>}, {pipeline_mode = #tpu.pipeline_mode<synchronous>, transform_indices = @transform_10, window_bounds = array<i64: 1, 128>}, {pipeline_mode = #tpu.pipeline_mode<synchronous>, transform_indices = @transform_11, window_bounds = array<i64: 1, 128>}, {pipeline_mode = #tpu.pipeline_mode<synchronous>, transform_indices = @transform_12, window_bounds = array<i64: 1, 128>}, {transform_indices = @transform_13, window_bounds = array<i64: 1, 8, 128>}]} {
    %c0 = arith.constant 0 : index
    %c0_0 = arith.constant 0 : index
    %c0_1 = arith.constant 0 : index
    %0 = vector.load %arg2[%c0, %c0_0, %c0_1] : memref<1x8x128xf32, #tpu.memory_space<vmem>>, vector<1x8x128xf32>
    %1 = vector.shape_cast %0 : vector<1x8x128xf32> to vector<8x128xf32>
    %2 = arith.truncf %1 : vector<8x128xf32> to vector<8x128xbf16>
    %3 = tpu.iota {dimensions = array<i32: 1>} : vector<1x128xi32>
    %c32_i32 = arith.constant 32 : i32
    %4 = vector.broadcast %c32_i32 : i32 to vector<1x128xi32>
    %5 = arith.cmpi slt, %3, %4 : vector<1x128xi32>
    %6 = arith.extui %5 : vector<1x128xi1> to vector<1x128xi32>
    %7 = arith.sitofp %6 : vector<1x128xi32> to vector<1x128xf32>
    %cst = arith.constant 0.000000e+00 : f32
    %8 = vector.broadcast %cst : f32 to vector<8x128xf32>
    %c0_2 = arith.constant 0 : index
    %c0_3 = arith.constant 0 : index
    %9 = vector.load %arg16[%c0_2, %c0_3] : memref<8x128xf32, #tpu.memory_space<vmem>>, vector<8x128xf32>
    tpu.vector_store %arg16[%c0_2, %c0_3], %8 {strides = array<i32>} : memref<8x128xf32, #tpu.memory_space<vmem>>, vector<8x128xf32>,
    %c0_i32 = arith.constant 0 : i32
    %c4_i32 = arith.constant 4 : i32
    %10 = arith.addi %c0_i32, %c4_i32 : i32
    %c1_i32 = arith.constant 1 : i32
    scf.for %arg17 = %c0_i32 to %10 step %c1_i32  : i32 {
      %90 = arith.index_cast %arg17 : i32 to index
      %c0_42 = arith.constant 0 : index
      %c0_43 = arith.constant 0 : index
      %91 = vector.load %arg5[%90, %c0_42, %c0_43] : memref<4x128x8xbf16, #tpu.memory_space<vmem>>, vector<1x128x8xbf16>
      %92 = vector.shape_cast %91 : vector<1x128x8xbf16> to vector<128x8xbf16>
      %cst_44 = arith.constant dense<0.000000e+00> : vector<8x8xf32>
      %93 = tpu.matmul %2, %92, %cst_44 {dimension_numbers = #tpu.dot_dimension_numbers<[1], [0], [0], [1], [0, 0, 1, 1], [], []>} : vector<8x128xbf16>, vector<128x8xbf16>, vector<8x8xf32> -> vector<8x8xf32>
      %94 = arith.truncf %93 : vector<8x8xf32> to vector<8x8xbf16>
      %c0_45 = arith.constant 0 : index
      %95 = arith.index_cast %arg17 : i32 to index
      %c0_46 = arith.constant 0 : index
      %c0_47 = arith.constant 0 : index
      %96 = vector.load %arg3[%c0_45, %95, %c0_46, %c0_47] : memref<1x4x8x8xbf16, #tpu.memory_space<vmem>>, vector<1x1x8x8xbf16>
      %97 = vector.shape_cast %96 : vector<1x1x8x8xbf16> to vector<8x8xbf16>
      %c0_48 = arith.constant 0 : index
      %98 = arith.index_cast %arg17 : i32 to index
      %c0_49 = arith.constant 0 : index
      %c0_50 = arith.constant 0 : index
      %99 = vector.load %arg4[%c0_48, %98, %c0_49, %c0_50] : memref<1x4x8x8xbf16, #tpu.memory_space<vmem>>, vector<1x1x8x8xbf16>
      %100 = vector.shape_cast %99 : vector<1x1x8x8xbf16> to vector<8x8xbf16>
      %cst_51 = arith.constant dense<0.000000e+00> : vector<8x8xf32>
      %101 = tpu.matmul %94, %97, %cst_51 {dimension_numbers = #tpu.dot_dimension_numbers<[1], [1], [0], [0], [0, 0, 1, 0], [], []>} : vector<8x8xbf16>, vector<8x8xbf16>, vector<8x8xf32> -> vector<8x8xf32>
      %cst_52 = arith.constant dense<0xFF800000> : vector<8xf32>
      %102 = vector.multi_reduction <maximumf>, %101, %cst_52 [1] : vector<8x8xf32> to vector<8xf32>
      %103 = vector.shape_cast %102 : vector<8xf32> to vector<8x1xf32>
      %104 = vector.broadcast %103 : vector<8x1xf32> to vector<8x8xf32>
      %105 = arith.subf %101, %104 : vector<8x8xf32>
      %106 = math.exp %105 : vector<8x8xf32>
      %cst_53 = arith.constant dense<0.000000e+00> : vector<8xf32>
      %107 = vector.multi_reduction <add>, %106, %cst_53 [1] : vector<8x8xf32> to vector<8xf32>
      %108 = vector.shape_cast %107 : vector<8xf32> to vector<8x1xf32>
      %109 = tpu.reciprocal %108 {approx = true} : vector<8x1xf32> -> vector<8x1xf32>
      %110 = vector.broadcast %109 : vector<8x1xf32> to vector<8x8xf32>
      %111 = arith.mulf %106, %110 : vector<8x8xf32>
      %112 = arith.truncf %111 : vector<8x8xf32> to vector<8x8xbf16>
      %cst_54 = arith.constant dense<0.000000e+00> : vector<8x8xf32>
      %113 = tpu.matmul %112, %100, %cst_54 {dimension_numbers = #tpu.dot_dimension_numbers<[1], [0], [0], [1], [0, 0, 1, 1], [], []>} : vector<8x8xbf16>, vector<8x8xbf16>, vector<8x8xf32> -> vector<8x8xf32>
      %c0_55 = arith.constant 0 : index
      %c0_56 = arith.constant 0 : index
      %114 = vector.load %arg16[%c0_55, %c0_56] : memref<8x128xf32, #tpu.memory_space<vmem>>, vector<8x128xf32>
      %115 = arith.truncf %113 : vector<8x8xf32> to vector<8x8xbf16>
      %116 = arith.index_cast %arg17 : i32 to index
      %c0_57 = arith.constant 0 : index
      %c0_58 = arith.constant 0 : index
      %117 = vector.load %arg6[%116, %c0_57, %c0_58] : memref<4x8x128xbf16, #tpu.memory_space<vmem>>, vector<1x8x128xbf16>
      %118 = vector.shape_cast %117 : vector<1x8x128xbf16> to vector<8x128xbf16>
      %cst_59 = arith.constant dense<0.000000e+00> : vector<8x128xf32>
      %119 = tpu.matmul %115, %118, %cst_59 {dimension_numbers = #tpu.dot_dimension_numbers<[1], [0], [0], [1], [0, 0, 1, 1], [], []>} : vector<8x8xbf16>, vector<8x128xbf16>, vector<8x128xf32> -> vector<8x128xf32>
      %120 = arith.addf %114, %119 : vector<8x128xf32>
      %c0_60 = arith.constant 0 : index
      %c0_61 = arith.constant 0 : index
      %121 = vector.load %arg16[%c0_60, %c0_61] : memref<8x128xf32, #tpu.memory_space<vmem>>, vector<8x128xf32>
      tpu.vector_store %arg16[%c0_60, %c0_61], %120 {strides = array<i32>} : memref<8x128xf32, #tpu.memory_space<vmem>>, vector<8x128xf32>,
    }
    %c4_i32_4 = arith.constant 4 : i32
    %c0_5 = arith.constant 0 : index
    %c0_6 = arith.constant 0 : index
    %11 = vector.load %arg16[%c0_5, %c0_6] : memref<8x128xf32, #tpu.memory_space<vmem>>, vector<8x128xf32>
    %12 = arith.addf %1, %11 : vector<8x128xf32>
    %c0_7 = arith.constant 0 : index
    %c0_8 = arith.constant 0 : index
    %13 = vector.load %arg7[%c0_7, %c0_8] : memref<1x128xf32, #tpu.memory_space<vmem>>, vector<1x128xf32>
    %c0_9 = arith.constant 0 : index
    %c0_10 = arith.constant 0 : index
    %14 = vector.load %arg8[%c0_9, %c0_10] : memref<1x128xf32, #tpu.memory_space<vmem>>, vector<1x128xf32>
    %cst_11 = arith.constant dense<0.000000e+00> : vector<8xf32>
    %15 = vector.multi_reduction <add>, %12, %cst_11 [1] : vector<8x128xf32> to vector<8xf32>
    %16 = vector.shape_cast %15 : vector<8xf32> to vector<8x1xf32>
    %cst_12 = arith.constant 3.125000e-02 : f32
    %17 = vector.broadcast %cst_12 : f32 to vector<8x1xf32>
    %18 = arith.mulf %16, %17 : vector<8x1xf32>
    %19 = vector.broadcast %18 : vector<8x1xf32> to vector<8x128xf32>
    %20 = arith.subf %12, %19 : vector<8x128xf32>
    %21 = vector.broadcast %7 : vector<1x128xf32> to vector<8x128xf32>
    %22 = arith.mulf %20, %21 : vector<8x128xf32>
    %23 = arith.mulf %22, %22 : vector<8x128xf32>
    %cst_13 = arith.constant dense<0.000000e+00> : vector<8xf32>
    %24 = vector.multi_reduction <add>, %23, %cst_13 [1] : vector<8x128xf32> to vector<8xf32>
    %25 = vector.shape_cast %24 : vector<8xf32> to vector<8x1xf32>
    %cst_14 = arith.constant 3.125000e-02 : f32
    %26 = vector.broadcast %cst_14 : f32 to vector<8x1xf32>
    %27 = arith.mulf %25, %26 : vector<8x1xf32>
    %cst_15 = arith.constant 9.99999974E-6 : f32
    %28 = vector.broadcast %cst_15 : f32 to vector<8x1xf32>
    %29 = arith.addf %27, %28 : vector<8x1xf32>
    %30 = math.rsqrt %29 : vector<8x1xf32>
    %31 = vector.broadcast %30 : vector<8x1xf32> to vector<8x128xf32>
    %32 = arith.mulf %22, %31 : vector<8x128xf32>
    %33 = vector.broadcast %13 : vector<1x128xf32> to vector<8x128xf32>
    %34 = arith.mulf %32, %33 : vector<8x128xf32>
    %35 = vector.broadcast %14 : vector<1x128xf32> to vector<8x128xf32>
    %36 = arith.addf %34, %35 : vector<8x128xf32>
    %37 = arith.truncf %36 : vector<8x128xf32> to vector<8x128xbf16>
    %c0_16 = arith.constant 0 : index
    %c0_17 = arith.constant 0 : index
    %38 = vector.load %arg9[%c0_16, %c0_17] : memref<128x128xbf16, #tpu.memory_space<vmem>>, vector<128x128xbf16>
    %cst_18 = arith.constant dense<0.000000e+00> : vector<8x128xf32>
    %39 = tpu.matmul %37, %38, %cst_18 {dimension_numbers = #tpu.dot_dimension_numbers<[1], [0], [0], [1], [0, 0, 1, 1], [], []>} : vector<8x128xbf16>, vector<128x128xbf16>, vector<8x128xf32> -> vector<8x128xf32>
    %c0_19 = arith.constant 0 : index
    %c0_20 = arith.constant 0 : index
    %40 = vector.load %arg10[%c0_19, %c0_20] : memref<1x128xf32, #tpu.memory_space<vmem>>, vector<1x128xf32>
    %41 = vector.broadcast %40 : vector<1x128xf32> to vector<8x128xf32>
    %42 = arith.addf %39, %41 : vector<8x128xf32>
    %cst_21 = arith.constant 5.000000e-01 : f32
    %43 = vector.broadcast %cst_21 : f32 to vector<8x128xf32>
    %44 = arith.mulf %43, %42 : vector<8x128xf32>
    %cst_22 = arith.constant 4.471500e-02 : f32
    %45 = vector.broadcast %cst_22 : f32 to vector<8x128xf32>
    %46 = arith.mulf %45, %42 : vector<8x128xf32>
    %47 = arith.mulf %46, %42 : vector<8x128xf32>
    %48 = arith.mulf %47, %42 : vector<8x128xf32>
    %49 = arith.addf %42, %48 : vector<8x128xf32>
    %cst_23 = arith.constant 0.797884583 : f32
    %50 = vector.broadcast %cst_23 : f32 to vector<8x128xf32>
    %51 = arith.mulf %50, %49 : vector<8x128xf32>
    %52 = math.tanh %51 : vector<8x128xf32>
    %cst_24 = arith.constant 1.000000e+00 : f32
    %53 = vector.broadcast %cst_24 : f32 to vector<8x128xf32>
    %54 = arith.addf %53, %52 : vector<8x128xf32>
    %55 = arith.mulf %44, %54 : vector<8x128xf32>
    %56 = arith.truncf %55 : vector<8x128xf32> to vector<8x128xbf16>
    %c0_25 = arith.constant 0 : index
    %c0_26 = arith.constant 0 : index
    %57 = vector.load %arg11[%c0_25, %c0_26] : memref<128x128xbf16, #tpu.memory_space<vmem>>, vector<128x128xbf16>
    %cst_27 = arith.constant dense<0.000000e+00> : vector<8x128xf32>
    %58 = tpu.matmul %56, %57, %cst_27 {dimension_numbers = #tpu.dot_dimension_numbers<[1], [0], [0], [1], [0, 0, 1, 1], [], []>} : vector<8x128xbf16>, vector<128x128xbf16>, vector<8x128xf32> -> vector<8x128xf32>
    %c0_28 = arith.constant 0 : index
    %c0_29 = arith.constant 0 : index
    %59 = vector.load %arg12[%c0_28, %c0_29] : memref<1x128xf32, #tpu.memory_space<vmem>>, vector<1x128xf32>
    %60 = vector.broadcast %59 : vector<1x128xf32> to vector<8x128xf32>
    %61 = arith.addf %58, %60 : vector<8x128xf32>
    %62 = arith.addf %36, %61 : vector<8x128xf32>
    %c0_30 = arith.constant 0 : index
    %c0_31 = arith.constant 0 : index
    %63 = vector.load %arg13[%c0_30, %c0_31] : memref<1x128xf32, #tpu.memory_space<vmem>>, vector<1x128xf32>
    %c0_32 = arith.constant 0 : index
    %c0_33 = arith.constant 0 : index
    %64 = vector.load %arg14[%c0_32, %c0_33] : memref<1x128xf32, #tpu.memory_space<vmem>>, vector<1x128xf32>
    %cst_34 = arith.constant dense<0.000000e+00> : vector<8xf32>
    %65 = vector.multi_reduction <add>, %62, %cst_34 [1] : vector<8x128xf32> to vector<8xf32>
    %66 = vector.shape_cast %65 : vector<8xf32> to vector<8x1xf32>
    %cst_35 = arith.constant 3.125000e-02 : f32
    %67 = vector.broadcast %cst_35 : f32 to vector<8x1xf32>
    %68 = arith.mulf %66, %67 : vector<8x1xf32>
    %69 = vector.broadcast %68 : vector<8x1xf32> to vector<8x128xf32>
    %70 = arith.subf %62, %69 : vector<8x128xf32>
    %71 = vector.broadcast %7 : vector<1x128xf32> to vector<8x128xf32>
    %72 = arith.mulf %70, %71 : vector<8x128xf32>
    %73 = arith.mulf %72, %72 : vector<8x128xf32>
    %cst_36 = arith.constant dense<0.000000e+00> : vector<8xf32>
    %74 = vector.multi_reduction <add>, %73, %cst_36 [1] : vector<8x128xf32> to vector<8xf32>
    %75 = vector.shape_cast %74 : vector<8xf32> to vector<8x1xf32>
    %cst_37 = arith.constant 3.125000e-02 : f32
    %76 = vector.broadcast %cst_37 : f32 to vector<8x1xf32>
    %77 = arith.mulf %75, %76 : vector<8x1xf32>
    %cst_38 = arith.constant 9.99999974E-6 : f32
    %78 = vector.broadcast %cst_38 : f32 to vector<8x1xf32>
    %79 = arith.addf %77, %78 : vector<8x1xf32>
    %80 = math.rsqrt %79 : vector<8x1xf32>
    %81 = vector.broadcast %80 : vector<8x1xf32> to vector<8x128xf32>
    %82 = arith.mulf %72, %81 : vector<8x128xf32>
    %83 = vector.broadcast %63 : vector<1x128xf32> to vector<8x128xf32>
    %84 = arith.mulf %82, %83 : vector<8x128xf32>
    %85 = vector.broadcast %64 : vector<1x128xf32> to vector<8x128xf32>
    %86 = arith.addf %84, %85 : vector<8x128xf32>
    %c0_39 = arith.constant 0 : index
    %c0_40 = arith.constant 0 : index
    %c0_41 = arith.constant 0 : index
    %87 = vector.load %arg15[%c0_39, %c0_40, %c0_41] : memref<1x8x128xf32, #tpu.memory_space<vmem>>, vector<1x8x128xf32>
    %88 = vector.shape_cast %87 : vector<1x8x128xf32> to vector<8x128xf32>
    %89 = vector.shape_cast %86 : vector<8x128xf32> to vector<1x8x128xf32>
    tpu.vector_store %arg15[%c0_39, %c0_40, %c0_41], %89 {strides = array<i32>} : memref<1x8x128xf32, #tpu.memory_space<vmem>>, vector<1x8x128xf32>,
    return
  }
  func.func @transform_0(%arg0: i32, %arg1: i32) -> (i32, i32, i32) {
    %c0_i32 = arith.constant 0 : i32
    %c0_i32_0 = arith.constant 0 : i32
    return %arg0, %arg1, %c0_i32 : i32, i32, i32
  }
  func.func @transform_1(%arg0: i32, %arg1: i32) -> (i32, i32, i32, i32) {
    %c0_i32 = arith.constant 0 : i32
    %c0_i32_0 = arith.constant 0 : i32
    %c0_i32_1 = arith.constant 0 : i32
    %c0_i32_2 = arith.constant 0 : i32
    return %arg0, %c0_i32, %c0_i32_0, %c0_i32_1 : i32, i32, i32, i32
  }
  func.func @transform_2(%arg0: i32, %arg1: i32) -> (i32, i32, i32, i32) {
    %c0_i32 = arith.constant 0 : i32
    %c0_i32_0 = arith.constant 0 : i32
    %c0_i32_1 = arith.constant 0 : i32
    %c0_i32_2 = arith.constant 0 : i32
    return %arg0, %c0_i32, %c0_i32_0, %c0_i32_1 : i32, i32, i32, i32
  }
  func.func @transform_3(%arg0: i32, %arg1: i32) -> (i32, i32, i32) {
    %c0_i32 = arith.constant 0 : i32
    %c0_i32_0 = arith.constant 0 : i32
    %c0_i32_1 = arith.constant 0 : i32
    %c0_i32_2 = arith.constant 0 : i32
    return %c0_i32, %c0_i32_0, %c0_i32_1 : i32, i32, i32
  }
  func.func @transform_4(%arg0: i32, %arg1: i32) -> (i32, i32, i32) {
    %c0_i32 = arith.constant 0 : i32
    %c0_i32_0 = arith.constant 0 : i32
    %c0_i32_1 = arith.constant 0 : i32
    %c0_i32_2 = arith.constant 0 : i32
    return %c0_i32, %c0_i32_0, %c0_i32_1 : i32, i32, i32
  }
  func.func @transform_5(%arg0: i32, %arg1: i32) -> (i32, i32) {
    %c0_i32 = arith.constant 0 : i32
    %c0_i32_0 = arith.constant 0 : i32
    %c0_i32_1 = arith.constant 0 : i32
    return %c0_i32, %c0_i32_0 : i32, i32
  }
  func.func @transform_6(%arg0: i32, %arg1: i32) -> (i32, i32) {
    %c0_i32 = arith.constant 0 : i32
    %c0_i32_0 = arith.constant 0 : i32
    %c0_i32_1 = arith.constant 0 : i32
    return %c0_i32, %c0_i32_0 : i32, i32
  }
  func.func @transform_7(%arg0: i32, %arg1: i32) -> (i32, i32) {
    %c0_i32 = arith.constant 0 : i32
    %c0_i32_0 = arith.constant 0 : i32
    %c0_i32_1 = arith.constant 0 : i32
    return %c0_i32, %c0_i32_0 : i32, i32
  }
  func.func @transform_8(%arg0: i32, %arg1: i32) -> (i32, i32) {
    %c0_i32 = arith.constant 0 : i32
    %c0_i32_0 = arith.constant 0 : i32
    %c0_i32_1 = arith.constant 0 : i32
    return %c0_i32, %c0_i32_0 : i32, i32
  }
  func.func @transform_9(%arg0: i32, %arg1: i32) -> (i32, i32) {
    %c0_i32 = arith.constant 0 : i32
    %c0_i32_0 = arith.constant 0 : i32
    %c0_i32_1 = arith.constant 0 : i32
    return %c0_i32, %c0_i32_0 : i32, i32
  }
  func.func @transform_10(%arg0: i32, %arg1: i32) -> (i32, i32) {
    %c0_i32 = arith.constant 0 : i32
    %c0_i32_0 = arith.constant 0 : i32
    %c0_i32_1 = arith.constant 0 : i32
    return %c0_i32, %c0_i32_0 : i32, i32
  }
  func.func @transform_11(%arg0: i32, %arg1: i32) -> (i32, i32) {
    %c0_i32 = arith.constant 0 : i32
    %c0_i32_0 = arith.constant 0 : i32
    %c0_i32_1 = arith.constant 0 : i32
    return %c0_i32, %c0_i32_0 : i32, i32
  }
  func.func @transform_12(%arg0: i32, %arg1: i32) -> (i32, i32) {
    %c0_i32 = arith.constant 0 : i32
    %c0_i32_0 = arith.constant 0 : i32
    %c0_i32_1 = arith.constant 0 : i32
    return %c0_i32, %c0_i32_0 : i32, i32
  }
  func.func @transform_13(%arg0: i32, %arg1: i32) -> (i32, i32, i32) {
    %c0_i32 = arith.constant 0 : i32
    %c0_i32_0 = arith.constant 0 : i32
    return %arg0, %arg1, %c0_i32 : i32, i32, i32
  }
}

module attributes {stable_mosaic.version = 11 : i64} {
  func.func @encoder_layer_kernel(%arg0: i32, %arg1: i32, %arg2: memref<1x8x128xf32, #tpu.memory_space<vmem>>, %arg3: memref<1x4x8x8xbf16, #tpu.memory_space<vmem>>, %arg4: memref<1x4x8x8xbf16, #tpu.memory_space<vmem>>, %arg5: memref<4x128x8xbf16, #tpu.memory_space<vmem>>, %arg6: memref<4x8x128xbf16, #tpu.memory_space<vmem>>, %arg7: memref<1x128xf32, #tpu.memory_space<vmem>>, %arg8: memref<1x128xf32, #tpu.memory_space<vmem>>, %arg9: memref<128x128xbf16, #tpu.memory_space<vmem>>, %arg10: memref<1x128xf32, #tpu.memory_space<vmem>>, %arg11: memref<128x128xbf16, #tpu.memory_space<vmem>>, %arg12: memref<1x128xf32, #tpu.memory_space<vmem>>, %arg13: memref<1x128xf32, #tpu.memory_space<vmem>>, %arg14: memref<1x128xf32, #tpu.memory_space<vmem>>, %arg15: memref<1x8x128xf32, #tpu.memory_space<vmem>>, %arg16: memref<8x128xf32, #tpu.memory_space<vmem>>) attributes {dimension_semantics = [#tpu.dimension_semantics<parallel>, #tpu.dimension_semantics<parallel>], iteration_bounds = array<i64: 2, 1>, scalar_prefetch = 0 : i64, scratch_operands = 1 : i64, tpu.core_type = #tpu.core_type<tc>, window_params = [{transform_indices = @transform_0, window_bounds = array<i64: 1, 8, 128>}, {transform_indices = @transform_1, window_bounds = array<i64: 1, 4, 8, 8>}, {transform_indices = @transform_2, window_bounds = array<i64: 1, 4, 8, 8>}, {pipeline_mode = #tpu.pipeline_mode<synchronous>, transform_indices = @transform_3, window_bounds = array<i64: 4, 128, 8>}, {pipeline_mode = #tpu.pipeline_mode<synchronous>, transform_indices = @transform_4, window_bounds = array<i64: 4, 8, 128>}, {pipeline_mode = #tpu.pipeline_mode<synchronous>, transform_indices = @transform_5, window_bounds = array<i64: 1, 128>}, {pipeline_mode = #tpu.pipeline_mode<synchronous>, transform_indices = @transform_6, window_bounds = array<i64: 1, 128>}, {pipeline_mode = #tpu.pipeline_mode<synchronous>, transform_indices = @transform_7, window_bounds = array<i64: 128, 128>}, {pipeline_mode = #tpu.pipeline_mode<synchronous>, transform_indices = @transform_8, window_bounds = array<i64: 1, 128>}, {pipeline_mode = #tpu.pipeline_mode<synchronous>, transform_indices = @transform_9, window_bounds = array<i64: 128, 128>}, {pipeline_mode = #tpu.pipeline_mode<synchronous>, transform_indices = @transform_10, window_bounds = array<i64: 1, 128>}, {pipeline_mode = #tpu.pipeline_mode<synchronous>, transform_indices = @transform_11, window_bounds = array<i64: 1, 128>}, {pipeline_mode = #tpu.pipeline_mode<synchronous>, transform_indices = @transform_12, window_bounds = array<i64: 1, 128>}, {transform_indices = @transform_13, window_bounds = array<i64: 1, 8, 128>}]} {
    %c0 = arith.constant 0 : index
    %c0_0 = arith.constant 0 : index
    %c0_1 = arith.constant 0 : index
    %0 = vector.load %arg2[%c0, %c0_0, %c0_1] : memref<1x8x128xf32, #tpu.memory_space<vmem>>, vector<1x8x128xf32>
    %1 = vector.shape_cast %0 : vector<1x8x128xf32> to vector<8x128xf32>
    %2 = arith.truncf %1 : vector<8x128xf32> to vector<8x128xbf16>
    %3 = tpu.iota {dimensions = array<i32: 1>} : vector<1x128xi32>
    %c32_i32 = arith.constant 32 : i32
    %4 = vector.broadcast %c32_i32 : i32 to vector<1x128xi32>
    %5 = arith.cmpi slt, %3, %4 : vector<1x128xi32>
    %6 = arith.extui %5 : vector<1x128xi1> to vector<1x128xi32>
    %7 = arith.sitofp %6 : vector<1x128xi32> to vector<1x128xf32>
    %cst = arith.constant 0.000000e+00 : f32
    %8 = vector.broadcast %cst : f32 to vector<8x128xf32>
    %c0_2 = arith.constant 0 : index
    %c0_3 = arith.constant 0 : index
    %9 = vector.load %arg16[%c0_2, %c0_3] : memref<8x128xf32, #tpu.memory_space<vmem>>, vector<8x128xf32>
    tpu.vector_store %arg16[%c0_2, %c0_3], %8 {strides = array<i32>} : memref<8x128xf32, #tpu.memory_space<vmem>>, vector<8x128xf32>,
    %c0_i32 = arith.constant 0 : i32
    %c4_i32 = arith.constant 4 : i32
    %10 = arith.addi %c0_i32, %c4_i32 : i32
    %c1_i32 = arith.constant 1 : i32
    scf.for %arg17 = %c0_i32 to %10 step %c1_i32  : i32 {
      %90 = arith.index_cast %arg17 : i32 to index
      %c0_42 = arith.constant 0 : index
      %c0_43 = arith.constant 0 : index
      %91 = vector.load %arg5[%90, %c0_42, %c0_43] : memref<4x128x8xbf16, #tpu.memory_space<vmem>>, vector<1x128x8xbf16>
      %92 = vector.shape_cast %91 : vector<1x128x8xbf16> to vector<128x8xbf16>
      %cst_44 = arith.constant dense<0.000000e+00> : vector<8x8xf32>
      %93 = tpu.matmul %2, %92, %cst_44 {dimension_numbers = #tpu.dot_dimension_numbers<[1], [0], [0], [1], [0, 0, 1, 1], [], []>} : vector<8x128xbf16>, vector<128x8xbf16>, vector<8x8xf32> -> vector<8x8xf32>
      %94 = arith.truncf %93 : vector<8x8xf32> to vector<8x8xbf16>
      %c0_45 = arith.constant 0 : index
      %95 = arith.index_cast %arg17 : i32 to index
      %c0_46 = arith.constant 0 : index
      %c0_47 = arith.constant 0 : index
      %96 = vector.load %arg3[%c0_45, %95, %c0_46, %c0_47] : memref<1x4x8x8xbf16, #tpu.memory_space<vmem>>, vector<1x1x8x8xbf16>
      %97 = vector.shape_cast %96 : vector<1x1x8x8xbf16> to vector<8x8xbf16>
      %c0_48 = arith.constant 0 : index
      %98 = arith.index_cast %arg17 : i32 to index
      %c0_49 = arith.constant 0 : index
      %c0_50 = arith.constant 0 : index
      %99 = vector.load %arg4[%c0_48, %98, %c0_49, %c0_50] : memref<1x4x8x8xbf16, #tpu.memory_space<vmem>>, vector<1x1x8x8xbf16>
      %100 = vector.shape_cast %99 : vector<1x1x8x8xbf16> to vector<8x8xbf16>
      %cst_51 = arith.constant dense<0.000000e+00> : vector<8x8xf32>
      %101 = tpu.matmul %94, %97, %cst_51 {dimension_numbers = #tpu.dot_dimension_numbers<[1], [1], [0], [0], [0, 0, 1, 0], [], []>} : vector<8x8xbf16>, vector<8x8xbf16>, vector<8x8xf32> -> vector<8x8xf32>
      %cst_52 = arith.constant dense<0xFF800000> : vector<8xf32>
      %102 = vector.multi_reduction <maximumf>, %101, %cst_52 [1] : vector<8x8xf32> to vector<8xf32>
      %103 = vector.shape_cast %102 : vector<8xf32> to vector<8x1xf32>
      %104 = vector.broadcast %103 : vector<8x1xf32> to vector<8x8xf32>
      %105 = arith.subf %101, %104 : vector<8x8xf32>
      %106 = math.exp %105 : vector<8x8xf32>
      %cst_53 = arith.constant dense<0.000000e+00> : vector<8xf32>
      %107 = vector.multi_reduction <add>, %106, %cst_53 [1] : vector<8x8xf32> to vector<8xf32>
      %108 = vector.shape_cast %107 : vector<8xf32> to vector<8x1xf32>
      %109 = tpu.reciprocal %108 {approx = true} : vector<8x1xf32> -> vector<8x1xf32>
      %110 = vector.broadcast %109 : vector<8x1xf32> to vector<8x8xf32>
      %111 = arith.mulf %106, %110 : vector<8x8xf32>
      %112 = arith.truncf %111 : vector<8x8xf32> to vector<8x8xbf16>
      %cst_54 = arith.constant dense<0.000000e+00> : vector<8x8xf32>
      %113 = tpu.matmul %112, %100, %cst_54 {dimension_numbers = #tpu.dot_dimension_numbers<[1], [0], [0], [1], [0, 0, 1, 1], [], []>} : vector<8x8xbf16>, vector<8x8xbf16>, vector<8x8xf32> -> vector<8x8xf32>
      %c0_55 = arith.constant 0 : index
      %c0_56 = arith.constant 0 : index
      %114 = vector.load %arg16[%c0_55, %c0_56] : memref<8x128xf32, #tpu.memory_space<vmem>>, vector<8x128xf32>
      %115 = arith.truncf %113 : vector<8x8xf32> to vector<8x8xbf16>
      %116 = arith.index_cast %arg17 : i32 to index
      %c0_57 = arith.constant 0 : index
      %c0_58 = arith.constant 0 : index
      %117 = vector.load %arg6[%116, %c0_57, %c0_58] : memref<4x8x128xbf16, #tpu.memory_space<vmem>>, vector<1x8x128xbf16>
      %118 = vector.shape_cast %117 : vector<1x8x128xbf16> to vector<8x128xbf16>
      %cst_59 = arith.constant dense<0.000000e+00> : vector<8x128xf32>
      %119 = tpu.matmul %115, %118, %cst_59 {dimension_numbers = #tpu.dot_dimension_numbers<[1], [0], [0], [1], [0, 0, 1, 1], [], []>} : vector<8x8xbf16>, vector<8x128xbf16>, vector<8x128xf32> -> vector<8x128xf32>
      %120 = arith.addf %114, %119 : vector<8x128xf32>
      %c0_60 = arith.constant 0 : index
      %c0_61 = arith.constant 0 : index
      %121 = vector.load %arg16[%c0_60, %c0_61] : memref<8x128xf32, #tpu.memory_space<vmem>>, vector<8x128xf32>
      tpu.vector_store %arg16[%c0_60, %c0_61], %120 {strides = array<i32>} : memref<8x128xf32, #tpu.memory_space<vmem>>, vector<8x128xf32>,
    }
    %c4_i32_4 = arith.constant 4 : i32
    %c0_5 = arith.constant 0 : index
    %c0_6 = arith.constant 0 : index
    %11 = vector.load %arg16[%c0_5, %c0_6] : memref<8x128xf32, #tpu.memory_space<vmem>>, vector<8x128xf32>
    %12 = arith.addf %1, %11 : vector<8x128xf32>
    %c0_7 = arith.constant 0 : index
    %c0_8 = arith.constant 0 : index
    %13 = vector.load %arg7[%c0_7, %c0_8] : memref<1x128xf32, #tpu.memory_space<vmem>>, vector<1x128xf32>
    %c0_9 = arith.constant 0 : index
    %c0_10 = arith.constant 0 : index
    %14 = vector.load %arg8[%c0_9, %c0_10] : memref<1x128xf32, #tpu.memory_space<vmem>>, vector<1x128xf32>
    %cst_11 = arith.constant dense<0.000000e+00> : vector<8xf32>
    %15 = vector.multi_reduction <add>, %12, %cst_11 [1] : vector<8x128xf32> to vector<8xf32>
    %16 = vector.shape_cast %15 : vector<8xf32> to vector<8x1xf32>
    %cst_12 = arith.constant 3.125000e-02 : f32
    %17 = vector.broadcast %cst_12 : f32 to vector<8x1xf32>
    %18 = arith.mulf %16, %17 : vector<8x1xf32>
    %19 = vector.broadcast %18 : vector<8x1xf32> to vector<8x128xf32>
    %20 = arith.subf %12, %19 : vector<8x128xf32>
    %21 = vector.broadcast %7 : vector<1x128xf32> to vector<8x128xf32>
    %22 = arith.mulf %20, %21 : vector<8x128xf32>
    %23 = arith.mulf %22, %22 : vector<8x128xf32>
    %cst_13 = arith.constant dense<0.000000e+00> : vector<8xf32>
    %24 = vector.multi_reduction <add>, %23, %cst_13 [1] : vector<8x128xf32> to vector<8xf32>
    %25 = vector.shape_cast %24 : vector<8xf32> to vector<8x1xf32>
    %cst_14 = arith.constant 3.125000e-02 : f32
    %26 = vector.broadcast %cst_14 : f32 to vector<8x1xf32>
    %27 = arith.mulf %25, %26 : vector<8x1xf32>
    %cst_15 = arith.constant 9.99999974E-6 : f32
    %28 = vector.broadcast %cst_15 : f32 to vector<8x1xf32>
    %29 = arith.addf %27, %28 : vector<8x1xf32>
    %30 = math.rsqrt %29 : vector<8x1xf32>
    %31 = vector.broadcast %30 : vector<8x1xf32> to vector<8x128xf32>
    %32 = arith.mulf %22, %31 : vector<8x128xf32>
    %33 = vector.broadcast %13 : vector<1x128xf32> to vector<8x128xf32>
    %34 = arith.mulf %32, %33 : vector<8x128xf32>
    %35 = vector.broadcast %14 : vector<1x128xf32> to vector<8x128xf32>
    %36 = arith.addf %34, %35 : vector<8x128xf32>
    %37 = arith.truncf %36 : vector<8x128xf32> to vector<8x128xbf16>
    %c0_16 = arith.constant 0 : index
    %c0_17 = arith.constant 0 : index
    %38 = vector.load %arg9[%c0_16, %c0_17] : memref<128x128xbf16, #tpu.memory_space<vmem>>, vector<128x128xbf16>
    %cst_18 = arith.constant dense<0.000000e+00> : vector<8x128xf32>
    %39 = tpu.matmul %37, %38, %cst_18 {dimension_numbers = #tpu.dot_dimension_numbers<[1], [0], [0], [1], [0, 0, 1, 1], [], []>} : vector<8x128xbf16>, vector<128x128xbf16>, vector<8x128xf32> -> vector<8x128xf32>
    %c0_19 = arith.constant 0 : index
    %c0_20 = arith.constant 0 : index
    %40 = vector.load %arg10[%c0_19, %c0_20] : memref<1x128xf32, #tpu.memory_space<vmem>>, vector<1x128xf32>
    %41 = vector.broadcast %40 : vector<1x128xf32> to vector<8x128xf32>
    %42 = arith.addf %39, %41 : vector<8x128xf32>
    %cst_21 = arith.constant 5.000000e-01 : f32
    %43 = vector.broadcast %cst_21 : f32 to vector<8x128xf32>
    %44 = arith.mulf %43, %42 : vector<8x128xf32>
    %cst_22 = arith.constant 4.471500e-02 : f32
    %45 = vector.broadcast %cst_22 : f32 to vector<8x128xf32>
    %46 = arith.mulf %45, %42 : vector<8x128xf32>
    %47 = arith.mulf %46, %42 : vector<8x128xf32>
    %48 = arith.mulf %47, %42 : vector<8x128xf32>
    %49 = arith.addf %42, %48 : vector<8x128xf32>
    %cst_23 = arith.constant 0.797884583 : f32
    %50 = vector.broadcast %cst_23 : f32 to vector<8x128xf32>
    %51 = arith.mulf %50, %49 : vector<8x128xf32>
    %52 = math.tanh %51 : vector<8x128xf32>
    %cst_24 = arith.constant 1.000000e+00 : f32
    %53 = vector.broadcast %cst_24 : f32 to vector<8x128xf32>
    %54 = arith.addf %53, %52 : vector<8x128xf32>
    %55 = arith.mulf %44, %54 : vector<8x128xf32>
    %56 = arith.truncf %55 : vector<8x128xf32> to vector<8x128xbf16>
    %c0_25 = arith.constant 0 : index
    %c0_26 = arith.constant 0 : index
    %57 = vector.load %arg11[%c0_25, %c0_26] : memref<128x128xbf16, #tpu.memory_space<vmem>>, vector<128x128xbf16>
    %cst_27 = arith.constant dense<0.000000e+00> : vector<8x128xf32>
    %58 = tpu.matmul %56, %57, %cst_27 {dimension_numbers = #tpu.dot_dimension_numbers<[1], [0], [0], [1], [0, 0, 1, 1], [], []>} : vector<8x128xbf16>, vector<128x128xbf16>, vector<8x128xf32> -> vector<8x128xf32>
    %c0_28 = arith.constant 0 : index
    %c0_29 = arith.constant 0 : index
    %59 = vector.load %arg12[%c0_28, %c0_29] : memref<1x128xf32, #tpu.memory_space<vmem>>, vector<1x128xf32>
    %60 = vector.broadcast %59 : vector<1x128xf32> to vector<8x128xf32>
    %61 = arith.addf %58, %60 : vector<8x128xf32>
    %62 = arith.addf %36, %61 : vector<8x128xf32>
    %c0_30 = arith.constant 0 : index
    %c0_31 = arith.constant 0 : index
    %63 = vector.load %arg13[%c0_30, %c0_31] : memref<1x128xf32, #tpu.memory_space<vmem>>, vector<1x128xf32>
    %c0_32 = arith.constant 0 : index
    %c0_33 = arith.constant 0 : index
    %64 = vector.load %arg14[%c0_32, %c0_33] : memref<1x128xf32, #tpu.memory_space<vmem>>, vector<1x128xf32>
    %cst_34 = arith.constant dense<0.000000e+00> : vector<8xf32>
    %65 = vector.multi_reduction <add>, %62, %cst_34 [1] : vector<8x128xf32> to vector<8xf32>
    %66 = vector.shape_cast %65 : vector<8xf32> to vector<8x1xf32>
    %cst_35 = arith.constant 3.125000e-02 : f32
    %67 = vector.broadcast %cst_35 : f32 to vector<8x1xf32>
    %68 = arith.mulf %66, %67 : vector<8x1xf32>
    %69 = vector.broadcast %68 : vector<8x1xf32> to vector<8x128xf32>
    %70 = arith.subf %62, %69 : vector<8x128xf32>
    %71 = vector.broadcast %7 : vector<1x128xf32> to vector<8x128xf32>
    %72 = arith.mulf %70, %71 : vector<8x128xf32>
    %73 = arith.mulf %72, %72 : vector<8x128xf32>
    %cst_36 = arith.constant dense<0.000000e+00> : vector<8xf32>
    %74 = vector.multi_reduction <add>, %73, %cst_36 [1] : vector<8x128xf32> to vector<8xf32>
    %75 = vector.shape_cast %74 : vector<8xf32> to vector<8x1xf32>
    %cst_37 = arith.constant 3.125000e-02 : f32
    %76 = vector.broadcast %cst_37 : f32 to vector<8x1xf32>
    %77 = arith.mulf %75, %76 : vector<8x1xf32>
    %cst_38 = arith.constant 9.99999974E-6 : f32
    %78 = vector.broadcast %cst_38 : f32 to vector<8x1xf32>
    %79 = arith.addf %77, %78 : vector<8x1xf32>
    %80 = math.rsqrt %79 : vector<8x1xf32>
    %81 = vector.broadcast %80 : vector<8x1xf32> to vector<8x128xf32>
    %82 = arith.mulf %72, %81 : vector<8x128xf32>
    %83 = vector.broadcast %63 : vector<1x128xf32> to vector<8x128xf32>
    %84 = arith.mulf %82, %83 : vector<8x128xf32>
    %85 = vector.broadcast %64 : vector<1x128xf32> to vector<8x128xf32>
    %86 = arith.addf %84, %85 : vector<8x128xf32>
    %c0_39 = arith.constant 0 : index
    %c0_40 = arith.constant 0 : index
    %c0_41 = arith.constant 0 : index
    %87 = vector.load %arg15[%c0_39, %c0_40, %c0_41] : memref<1x8x128xf32, #tpu.memory_space<vmem>>, vector<1x8x128xf32>
    %88 = vector.shape_cast %87 : vector<1x8x128xf32> to vector<8x128xf32>
    %89 = vector.shape_cast %86 : vector<8x128xf32> to vector<1x8x128xf32>
    tpu.vector_store %arg15[%c0_39, %c0_40, %c0_41], %89 {strides = array<i32>} : memref<1x8x128xf32, #tpu.memory_space<vmem>>, vector<1x8x128xf32>,
    return
  }
  func.func @transform_0(%arg0: i32, %arg1: i32) -> (i32, i32, i32) {
    %c0_i32 = arith.constant 0 : i32
    %c0_i32_0 = arith.constant 0 : i32
    return %arg0, %arg1, %c0_i32 : i32, i32, i32
  }
  func.func @transform_1(%arg0: i32, %arg1: i32) -> (i32, i32, i32, i32) {
    %c0_i32 = arith.constant 0 : i32
    %c0_i32_0 = arith.constant 0 : i32
    %c0_i32_1 = arith.constant 0 : i32
    %c0_i32_2 = arith.constant 0 : i32
    return %arg0, %c0_i32, %c0_i32_0, %c0_i32_1 : i32, i32, i32, i32
  }
  func.func @transform_2(%arg0: i32, %arg1: i32) -> (i32, i32, i32, i32) {
    %c0_i32 = arith.constant 0 : i32
    %c0_i32_0 = arith.constant 0 : i32
    %c0_i32_1 = arith.constant 0 : i32
    %c0_i32_2 = arith.constant 0 : i32
    return %arg0, %c0_i32, %c0_i32_0, %c0_i32_1 : i32, i32, i32, i32
  }
  func.func @transform_3(%arg0: i32, %arg1: i32) -> (i32, i32, i32) {
    %c0_i32 = arith.constant 0 : i32
    %c0_i32_0 = arith.constant 0 : i32
    %c0_i32_1 = arith.constant 0 : i32
    %c0_i32_2 = arith.constant 0 : i32
    return %c0_i32, %c0_i32_0, %c0_i32_1 : i32, i32, i32
  }
  func.func @transform_4(%arg0: i32, %arg1: i32) -> (i32, i32, i32) {
    %c0_i32 = arith.constant 0 : i32
    %c0_i32_0 = arith.constant 0 : i32
    %c0_i32_1 = arith.constant 0 : i32
    %c0_i32_2 = arith.constant 0 : i32
    return %c0_i32, %c0_i32_0, %c0_i32_1 : i32, i32, i32
  }
  func.func @transform_5(%arg0: i32, %arg1: i32) -> (i32, i32) {
    %c0_i32 = arith.constant 0 : i32
    %c0_i32_0 = arith.constant 0 : i32
    %c0_i32_1 = arith.constant 0 : i32
    return %c0_i32, %c0_i32_0 : i32, i32
  }
  func.func @transform_6(%arg0: i32, %arg1: i32) -> (i32, i32) {
    %c0_i32 = arith.constant 0 : i32
    %c0_i32_0 = arith.constant 0 : i32
    %c0_i32_1 = arith.constant 0 : i32
    return %c0_i32, %c0_i32_0 : i32, i32
  }
  func.func @transform_7(%arg0: i32, %arg1: i32) -> (i32, i32) {
    %c0_i32 = arith.constant 0 : i32
    %c0_i32_0 = arith.constant 0 : i32
    %c0_i32_1 = arith.constant 0 : i32
    return %c0_i32, %c0_i32_0 : i32, i32
  }
  func.func @transform_8(%arg0: i32, %arg1: i32) -> (i32, i32) {
    %c0_i32 = arith.constant 0 : i32
    %c0_i32_0 = arith.constant 0 : i32
    %c0_i32_1 = arith.constant 0 : i32
    return %c0_i32, %c0_i32_0 : i32, i32
  }
  func.func @transform_9(%arg0: i32, %arg1: i32) -> (i32, i32) {
    %c0_i32 = arith.constant 0 : i32
    %c0_i32_0 = arith.constant 0 : i32
    %c0_i32_1 = arith.constant 0 : i32
    return %c0_i32, %c0_i32_0 : i32, i32
  }
  func.func @transform_10(%arg0: i32, %arg1: i32) -> (i32, i32) {
    %c0_i32 = arith.constant 0 : i32
    %c0_i32_0 = arith.constant 0 : i32
    %c0_i32_1 = arith.constant 0 : i32
    return %c0_i32, %c0_i32_0 : i32, i32
  }
  func.func @transform_11(%arg0: i32, %arg1: i32) -> (i32, i32) {
    %c0_i32 = arith.constant 0 : i32
    %c0_i32_0 = arith.constant 0 : i32
    %c0_i32_1 = arith.constant 0 : i32
    return %c0_i32, %c0_i32_0 : i32, i32
  }
  func.func @transform_12(%arg0: i32, %arg1: i32) -> (i32, i32) {
    %c0_i32 = arith.constant 0 : i32
    %c0_i32_0 = arith.constant 0 : i32
    %c0_i32_1 = arith.constant 0 : i32
    return %c0_i32, %c0_i32_0 : i32, i32
  }
  func.func @transform_13(%arg0: i32, %arg1: i32) -> (i32, i32, i32) {
    %c0_i32 = arith.constant 0 : i32
    %c0_i32_0 = arith.constant 0 : i32
    return %arg0, %arg1, %c0_i32 : i32, i32, i32
  }
}

</mosaic_0001>

<llo_original>
// kernel: tpu_custom_call.1
$region0: #{tpu_custom_call.1}
  #allocation0 [shape = 'u32[]', space=smem, size = 0x4, offset = 0x4, fixed_abs, tag = 'smem constant byte address 0x4 - core index']
  #allocation1 [shape = 'u32[144,128]{1,0:T(1,128)}', space=vmem, size = 0x12000, scoped, tag = 'internal scratch']
  #allocation2 [shape = 'f32[8,128]{1,0:T(8,128)}', space=vmem, size = 0x1000, scoped, tag = 'scratch operand']
  %s0 = inlined_call_operand.vmem [shape: f32[2,8,128], index: 0, kind: input, shape index: {}]
  %s1 = inlined_call_operand.vmem [shape: bf16[2,4,8,8], index: 1, kind: input, shape index: {}]
  %s2 = inlined_call_operand.vmem [shape: bf16[2,4,8,8], index: 2, kind: input, shape index: {}]
  %s3 = inlined_call_operand.vmem [shape: bf16[4,128,8], index: 3, kind: input, shape index: {}]
  %s4 = inlined_call_operand.vmem [shape: bf16[4,8,128], index: 4, kind: input, shape index: {}]
  %s5 = inlined_call_operand.vmem [shape: f32[1,128], index: 5, kind: input, shape index: {}]
  %s6 = inlined_call_operand.vmem [shape: f32[1,128], index: 6, kind: input, shape index: {}]
  %s7 = inlined_call_operand.vmem [shape: bf16[128,128], index: 7, kind: input, shape index: {}]
  %s8 = inlined_call_operand.vmem [shape: f32[1,128], index: 8, kind: input, shape index: {}]
  %s9 = inlined_call_operand.vmem [shape: bf16[128,128], index: 9, kind: input, shape index: {}]
  %s10 = inlined_call_operand.vmem [shape: f32[1,128], index: 10, kind: input, shape index: {}]
  %s11 = inlined_call_operand.vmem [shape: f32[1,128], index: 11, kind: input, shape index: {}]
  %s12 = inlined_call_operand.vmem [shape: f32[1,128], index: 12, kind: input, shape index: {}]
  %s13 = inlined_call_operand.hbm [shape: f32[2,8,128], index: 13, kind: output, shape index: {}]
  %s14 = sld [smem:[#allocation0]]
  $region92: #{tpu_custom_call.1} parent=0
    _
  %s16 = ssub.s32 1, %s14
  %s17 = scalar_select 0, %s16, %s14
  $region1: #{tpu_custom_call.1} parent=0
    #allocation3 [shape = 'u8[8192]{0}', space=vmem, size = 0x2000, scoped, tag = 'output window, operand 0']
    #allocation4 [shape = 's32[2]{0}', space=sflag, size = 0x8, scoped, tag = 'scoped memory for tpu_custom_call.1']
    %18 = vsyncpa [#allocation4], 0
    %s19 = scalar_lea.sflag [#allocation4], 1
    %20 = vsyncpa %s19, 0
    loop: start=0, step=1, limit=4
    $region2: #{tpu_custom_call.1} parent=1 // loop_pre_header
      _
    $region3: #{tpu_custom_call.1} parent=1 // loop_header
      %s22 = sphi 0, %s26
      %p23 = scmp.ge.s32.totalorder %s22, 4
      %s29 = sphi 0, %s41
      %s30 = sphi 0, %s37
      %s31 = sphi 0, %s29
      %s32 = sphi 0, %s30
      %s33 = sphi 0, %s31
      %s34 = sphi 0, %s32
      %s46 = sphi 0, %s48
      %s49 = sphi 0, %s46
      %s50 = sphi 0, %s49
      %s66 = sphi 0, %s50
      %s72 = sphi 0, %s74
      %s75 = sphi 0, %s72
      %s76 = sphi 0, %s75
      %s92 = sphi 0, %s76
      %s98 = sphi 0, %s100
      %s101 = sphi 0, %s98
      %s102 = sphi 0, %s101
      %s118 = sphi 0, %s102
      %s122 = sphi 0, %s122
      %s124 = sphi 0, %s122
      %s125 = sphi 0, %s124
      %s139 = sphi 0, %s125
      %s143 = sphi 0, %s143
      %s145 = sphi 0, %s143
      %s146 = sphi 0, %s145
      %s160 = sphi 0, %s146
      %s164 = sphi 0, %s164
      %s166 = sphi 0, %s164
      %s167 = sphi 0, %s166
      %s181 = sphi 0, %s167
      %s185 = sphi 0, %s185
      %s187 = sphi 0, %s185
      %s188 = sphi 0, %s187
      %s202 = sphi 0, %s188
      %s206 = sphi 0, %s206
      %s208 = sphi 0, %s206
      %s209 = sphi 0, %s208
      %s223 = sphi 0, %s209
      %s227 = sphi 0, %s227
      %s229 = sphi 0, %s227
      %s230 = sphi 0, %s229
      %s244 = sphi 0, %s230
      %s248 = sphi 0, %s248
      %s250 = sphi 0, %s248
      %s251 = sphi 0, %s250
      %s265 = sphi 0, %s251
      %s269 = sphi 0, %s269
      %s271 = sphi 0, %s269
      %s272 = sphi 0, %s271
      %s286 = sphi 0, %s272
      %s290 = sphi 0, %s290
      %s292 = sphi 0, %s290
      %s293 = sphi 0, %s292
      %s307 = sphi 0, %s293
      %s311 = sphi 0, %s311
      %s313 = sphi 0, %s311
      %s314 = sphi 0, %s313
      %s328 = sphi 0, %s314
      %s336 = sphi 0, %s338
      %s339 = sphi 0, %s336
      %s340 = sphi 0, %s339
      %s356 = sphi 0, %s340
    $region4: #{tpu_custom_call.1} parent=1 // loop_header_branch
      %25 = sbr.rel (%p23) target = $region8
    $region5: #{tpu_custom_call.1} parent=1 // loop_body
      %s27 = ssub.s32 %s22, 1
      %s28 = ssub.s32 %s22, 2
      %s35 = sadd.s32 1, %s30
      %p36 = scmp.ge.s32.totalorder %s35, 1
      %s37 = scalar_select %p36, 0, %s35
      %s38 = sadd.s32 1, %s29
      %s39 = scalar_select %p36, %s38, %s29
      %p40 = scmp.ge.s32.totalorder %s39, 2
      %s41 = scalar_select %p40, 0, %s39
      %s42 = ssub.s32 %s29, %s41
      %s43 = ssub.s32 %s30, %s37
      %s44 = sor.u32 %s42, %s43
      %p45 = scmp.eq.s32.totalorder %s44, 0
      %s47 = sadd.s32 %s46, 1
      %s48 = scalar_select %p45, %s46, %s47
      %p51 = pneg %p45
      %p52 = scmp.eq.s32.totalorder %s22, 1
      %p53 = por %p51, %p52
      %p54 = scmp.ne.s32.totalorder %s46, %s49
      %p55 = scmp.eq.s32.totalorder %s22, 0
      %p56 = por %p54, %p55
      %p57 = scmp.ne.s32.totalorder %s46, %s49
      %p58 = scmp.eq.s32.totalorder %s27, 1
      %p59 = por %p57, %p58
      %p60 = scmp.ne.s32.totalorder %s49, %s50
      %p61 = scmp.eq.s32.totalorder %s27, 0
      %p62 = por %p60, %p61
      %p63 = scmp.ne.s32.totalorder %s49, %s50
      %p64 = scmp.eq.s32.totalorder %s28, 1
      %p65 = por %p63, %p64
      %p67 = scmp.ne.s32.totalorder %s50, %s66
      %p68 = scmp.eq.s32.totalorder %s28, 0
      %p69 = por %p67, %p68
      %s70 = ssub.s32 %s29, %s41
      %p71 = scmp.eq.s32.totalorder %s70, 0
      %s73 = sadd.s32 %s72, 1
      %s74 = scalar_select %p71, %s72, %s73
      %p77 = pneg %p71
      %p78 = scmp.eq.s32.totalorder %s22, 1
      %p79 = por %p77, %p78
      %p80 = scmp.ne.s32.totalorder %s72, %s75
      %p81 = scmp.eq.s32.totalorder %s22, 0
      %p82 = por %p80, %p81
      %p83 = scmp.ne.s32.totalorder %s72, %s75
      %p84 = scmp.eq.s32.totalorder %s27, 1
      %p85 = por %p83, %p84
      %p86 = scmp.ne.s32.totalorder %s75, %s76
      %p87 = scmp.eq.s32.totalorder %s27, 0
      %p88 = por %p86, %p87
      %p89 = scmp.ne.s32.totalorder %s75, %s76
      %p90 = scmp.eq.s32.totalorder %s28, 1
      %p91 = por %p89, %p90
      %p93 = scmp.ne.s32.totalorder %s76, %s92
      %p94 = scmp.eq.s32.totalorder %s28, 0
      %p95 = por %p93, %p94
      %s96 = ssub.s32 %s29, %s41
      %p97 = scmp.eq.s32.totalorder %s96, 0
      %s99 = sadd.s32 %s98, 1
      %s100 = scalar_select %p97, %s98, %s99
      %p103 = pneg %p97
      %p104 = scmp.eq.s32.totalorder %s22, 1
      %p105 = por %p103, %p104
      %p106 = scmp.ne.s32.totalorder %s98, %s101
      %p107 = scmp.eq.s32.totalorder %s22, 0
      %p108 = por %p106, %p107
      %p109 = scmp.ne.s32.totalorder %s98, %s101
      %p110 = scmp.eq.s32.totalorder %s27, 1
      %p111 = por %p109, %p110
      %p112 = scmp.ne.s32.totalorder %s101, %s102
      %p113 = scmp.eq.s32.totalorder %s27, 0
      %p114 = por %p112, %p113
      %p115 = scmp.ne.s32.totalorder %s101, %s102
      %p116 = scmp.eq.s32.totalorder %s28, 1
      %p117 = por %p115, %p116
      %p119 = scmp.ne.s32.totalorder %s102, %s118
      %p120 = scmp.eq.s32.totalorder %s28, 0
      %p121 = por %p119, %p120
      %s123 = sadd.s32 %s122, 1
      %p126 = scmp.eq.s32.totalorder %s22, 1
      %p127 = scmp.ne.s32.totalorder %s122, %s124
      %p128 = scmp.eq.s32.totalorder %s22, 0
      %p129 = por %p127, %p128
      %p130 = scmp.ne.s32.totalorder %s122, %s124
      %p131 = scmp.eq.s32.totalorder %s27, 1
      %p132 = por %p130, %p131
      %p133 = scmp.ne.s32.totalorder %s124, %s125
      %p134 = scmp.eq.s32.totalorder %s27, 0
      %p135 = por %p133, %p134
      %p136 = scmp.ne.s32.totalorder %s124, %s125
      %p137 = scmp.eq.s32.totalorder %s28, 1
      %p138 = por %p136, %p137
      %p140 = scmp.ne.s32.totalorder %s125, %s139
      %p141 = scmp.eq.s32.totalorder %s28, 0
      %p142 = por %p140, %p141
      %s144 = sadd.s32 %s143, 1
      %p147 = scmp.eq.s32.totalorder %s22, 1
      %p148 = scmp.ne.s32.totalorder %s143, %s145
      %p149 = scmp.eq.s32.totalorder %s22, 0
      %p150 = por %p148, %p149
      %p151 = scmp.ne.s32.totalorder %s143, %s145
      %p152 = scmp.eq.s32.totalorder %s27, 1
      %p153 = por %p151, %p152
      %p154 = scmp.ne.s32.totalorder %s145, %s146
      %p155 = scmp.eq.s32.totalorder %s27, 0
      %p156 = por %p154, %p155
      %p157 = scmp.ne.s32.totalorder %s145, %s146
      %p158 = scmp.eq.s32.totalorder %s28, 1
      %p159 = por %p157, %p158
      %p161 = scmp.ne.s32.totalorder %s146, %s160
      %p162 = scmp.eq.s32.totalorder %s28, 0
      %p163 = por %p161, %p162
      %s165 = sadd.s32 %s164, 1
      %p168 = scmp.eq.s32.totalorder %s22, 1
      %p169 = scmp.ne.s32.totalorder %s164, %s166
      %p170 = scmp.eq.s32.totalorder %s22, 0
      %p171 = por %p169, %p170
      %p172 = scmp.ne.s32.totalorder %s164, %s166
      %p173 = scmp.eq.s32.totalorder %s27, 1
      %p174 = por %p172, %p173
      %p175 = scmp.ne.s32.totalorder %s166, %s167
      %p176 = scmp.eq.s32.totalorder %s27, 0
      %p177 = por %p175, %p176
      %p178 = scmp.ne.s32.totalorder %s166, %s167
      %p179 = scmp.eq.s32.totalorder %s28, 1
      %p180 = por %p178, %p179
      %p182 = scmp.ne.s32.totalorder %s167, %s181
      %p183 = scmp.eq.s32.totalorder %s28, 0
      %p184 = por %p182, %p183
      %s186 = sadd.s32 %s185, 1
      %p189 = scmp.eq.s32.totalorder %s22, 1
      %p190 = scmp.ne.s32.totalorder %s185, %s187
      %p191 = scmp.eq.s32.totalorder %s22, 0
      %p192 = por %p190, %p191
      %p193 = scmp.ne.s32.totalorder %s185, %s187
      %p194 = scmp.eq.s32.totalorder %s27, 1
      %p195 = por %p193, %p194
      %p196 = scmp.ne.s32.totalorder %s187, %s188
      %p197 = scmp.eq.s32.totalorder %s27, 0
      %p198 = por %p196, %p197
      %p199 = scmp.ne.s32.totalorder %s187, %s188
      %p200 = scmp.eq.s32.totalorder %s28, 1
      %p201 = por %p199, %p200
      %p203 = scmp.ne.s32.totalorder %s188, %s202
      %p204 = scmp.eq.s32.totalorder %s28, 0
      %p205 = por %p203, %p204
      %s207 = sadd.s32 %s206, 1
      %p210 = scmp.eq.s32.totalorder %s22, 1
      %p211 = scmp.ne.s32.totalorder %s206, %s208
      %p212 = scmp.eq.s32.totalorder %s22, 0
      %p213 = por %p211, %p212
      %p214 = scmp.ne.s32.totalorder %s206, %s208
      %p215 = scmp.eq.s32.totalorder %s27, 1
      %p216 = por %p214, %p215
      %p217 = scmp.ne.s32.totalorder %s208, %s209
      %p218 = scmp.eq.s32.totalorder %s27, 0
      %p219 = por %p217, %p218
      %p220 = scmp.ne.s32.totalorder %s208, %s209
      %p221 = scmp.eq.s32.totalorder %s28, 1
      %p222 = por %p220, %p221
      %p224 = scmp.ne.s32.totalorder %s209, %s223
      %p225 = scmp.eq.s32.totalorder %s28, 0
      %p226 = por %p224, %p225
      %s228 = sadd.s32 %s227, 1
      %p231 = scmp.eq.s32.totalorder %s22, 1
      %p232 = scmp.ne.s32.totalorder %s227, %s229
      %p233 = scmp.eq.s32.totalorder %s22, 0
      %p234 = por %p232, %p233
      %p235 = scmp.ne.s32.totalorder %s227, %s229
      %p236 = scmp.eq.s32.totalorder %s27, 1
      %p237 = por %p235, %p236
      %p238 = scmp.ne.s32.totalorder %s229, %s230
      %p239 = scmp.eq.s32.totalorder %s27, 0
      %p240 = por %p238, %p239
      %p241 = scmp.ne.s32.totalorder %s229, %s230
      %p242 = scmp.eq.s32.totalorder %s28, 1
      %p243 = por %p241, %p242
      %p245 = scmp.ne.s32.totalorder %s230, %s244
      %p246 = scmp.eq.s32.totalorder %s28, 0
      %p247 = por %p245, %p246
      %s249 = sadd.s32 %s248, 1
      %p252 = scmp.eq.s32.totalorder %s22, 1
      %p253 = scmp.ne.s32.totalorder %s248, %s250
      %p254 = scmp.eq.s32.totalorder %s22, 0
      %p255 = por %p253, %p254
      %p256 = scmp.ne.s32.totalorder %s248, %s250
      %p257 = scmp.eq.s32.totalorder %s27, 1
      %p258 = por %p256, %p257
      %p259 = scmp.ne.s32.totalorder %s250, %s251
      %p260 = scmp.eq.s32.totalorder %s27, 0
      %p261 = por %p259, %p260
      %p262 = scmp.ne.s32.totalorder %s250, %s251
      %p263 = scmp.eq.s32.totalorder %s28, 1
      %p264 = por %p262, %p263
      %p266 = scmp.ne.s32.totalorder %s251, %s265
      %p267 = scmp.eq.s32.totalorder %s28, 0
      %p268 = por %p266, %p267
      %s270 = sadd.s32 %s269, 1
      %p273 = scmp.eq.s32.totalorder %s22, 1
      %p274 = scmp.ne.s32.totalorder %s269, %s271
      %p275 = scmp.eq.s32.totalorder %s22, 0
      %p276 = por %p274, %p275
      %p277 = scmp.ne.s32.totalorder %s269, %s271
      %p278 = scmp.eq.s32.totalorder %s27, 1
      %p279 = por %p277, %p278
      %p280 = scmp.ne.s32.totalorder %s271, %s272
      %p281 = scmp.eq.s32.totalorder %s27, 0
      %p282 = por %p280, %p281
      %p283 = scmp.ne.s32.totalorder %s271, %s272
      %p284 = scmp.eq.s32.totalorder %s28, 1
      %p285 = por %p283, %p284
      %p287 = scmp.ne.s32.totalorder %s272, %s286
      %p288 = scmp.eq.s32.totalorder %s28, 0
      %p289 = por %p287, %p288
      %s291 = sadd.s32 %s290, 1
      %p294 = scmp.eq.s32.totalorder %s22, 1
      %p295 = scmp.ne.s32.totalorder %s290, %s292
      %p296 = scmp.eq.s32.totalorder %s22, 0
      %p297 = por %p295, %p296
      %p298 = scmp.ne.s32.totalorder %s290, %s292
      %p299 = scmp.eq.s32.totalorder %s27, 1
      %p300 = por %p298, %p299
      %p301 = scmp.ne.s32.totalorder %s292, %s293
      %p302 = scmp.eq.s32.totalorder %s27, 0
      %p303 = por %p301, %p302
      %p304 = scmp.ne.s32.totalorder %s292, %s293
      %p305 = scmp.eq.s32.totalorder %s28, 1
      %p306 = por %p304, %p305
      %p308 = scmp.ne.s32.totalorder %s293, %s307
      %p309 = scmp.eq.s32.totalorder %s28, 0
      %p310 = por %p308, %p309
      %s312 = sadd.s32 %s311, 1
      %p315 = scmp.eq.s32.totalorder %s22, 1
      %p316 = scmp.ne.s32.totalorder %s311, %s313
      %p317 = scmp.eq.s32.totalorder %s22, 0
      %p318 = por %p316, %p317
      %p319 = scmp.ne.s32.totalorder %s311, %s313
      %p320 = scmp.eq.s32.totalorder %s27, 1
      %p321 = por %p319, %p320
      %p322 = scmp.ne.s32.totalorder %s313, %s314
      %p323 = scmp.eq.s32.totalorder %s27, 0
      %p324 = por %p322, %p323
      %p325 = scmp.ne.s32.totalorder %s313, %s314
      %p326 = scmp.eq.s32.totalorder %s28, 1
      %p327 = por %p325, %p326
      %p329 = scmp.ne.s32.totalorder %s314, %s328
      %p330 = scmp.eq.s32.totalorder %s28, 0
      %p331 = por %p329, %p330
      %s332 = ssub.s32 %s29, %s41
      %s333 = ssub.s32 %s30, %s37
      %s334 = sor.u32 %s332, %s333
      %p335 = scmp.eq.s32.totalorder %s334, 0
      %s337 = sadd.s32 %s336, 1
      %s338 = scalar_select %p335, %s336, %s337
      %p341 = pneg %p335
      %p342 = scmp.eq.s32.totalorder %s22, 1
      %p343 = por %p341, %p342
      %p344 = scmp.ne.s32.totalorder %s336, %s339
      %p345 = scmp.eq.s32.totalorder %s22, 0
      %p346 = por %p344, %p345
      %p347 = scmp.ne.s32.totalorder %s336, %s339
      %p348 = scmp.eq.s32.totalorder %s27, 1
      %p349 = por %p347, %p348
      %p350 = scmp.ne.s32.totalorder %s339, %s340
      %p351 = scmp.eq.s32.totalorder %s27, 0
      %p352 = por %p350, %p351
      %p353 = scmp.ne.s32.totalorder %s339, %s340
      %p354 = scmp.eq.s32.totalorder %s28, 1
      %p355 = por %p353, %p354
      %p357 = scmp.ne.s32.totalorder %s340, %s356
      %p358 = scmp.eq.s32.totalorder %s28, 0
      %p359 = por %p357, %p358
      %p360 = scmp.le.s32.totalorder 1, %s22
      %p361 = scmp.lt.s32.totalorder %s22, 3
      %p362 = pnand %p360, %p361
      %p363 = pneg %p362
      // Predicated region
      $region9: #{tpu_custom_call.1} parent=5 // pred_check
        _
      $region10: #{tpu_custom_call.1} parent=5 // pred_check_branch
        %365 = sbr.rel (%p362) target = $region12
      $region11: #{tpu_custom_call.1} parent=5 // pred_region
        %s366 = ssub.s32 %s22, 1
        // Predicated region
        $region13: #{tpu_custom_call.1} parent=11 // pred_check
          %p367 = pneg %p135
        $region14: #{tpu_custom_call.1} parent=11 // pred_check_branch
          %369 = sbr.rel (%p367) target = $region16
        $region15: #{tpu_custom_call.1} parent=11 // pred_region
          _
        $region16: #{tpu_custom_call.1} parent=11 // pred_fallthru
          _
        // Predicated region
        $region17: #{tpu_custom_call.1} parent=11 // pred_check
          %p370 = pneg %p156
        $region18: #{tpu_custom_call.1} parent=11 // pred_check_branch
          %372 = sbr.rel (%p370) target = $region20
        $region19: #{tpu_custom_call.1} parent=11 // pred_region
          _
        $region20: #{tpu_custom_call.1} parent=11 // pred_fallthru
          _
        // Predicated region
        $region21: #{tpu_custom_call.1} parent=11 // pred_check
          %p373 = pneg %p177
        $region22: #{tpu_custom_call.1} parent=11 // pred_check_branch
          %375 = sbr.rel (%p373) target = $region24
        $region23: #{tpu_custom_call.1} parent=11 // pred_region
          _
        $region24: #{tpu_custom_call.1} parent=11 // pred_fallthru
          _
        // Predicated region
        $region25: #{tpu_custom_call.1} parent=11 // pred_check
          %p376 = pneg %p198
        $region26: #{tpu_custom_call.1} parent=11 // pred_check_branch
          %378 = sbr.rel (%p376) target = $region28
        $region27: #{tpu_custom_call.1} parent=11 // pred_region
          _
        $region28: #{tpu_custom_call.1} parent=11 // pred_fallthru
          _
        // Predicated region
        $region29: #{tpu_custom_call.1} parent=11 // pred_check
          %p379 = pneg %p219
        $region30: #{tpu_custom_call.1} parent=11 // pred_check_branch
          %381 = sbr.rel (%p379) target = $region32
        $region31: #{tpu_custom_call.1} parent=11 // pred_region
          _
        $region32: #{tpu_custom_call.1} parent=11 // pred_fallthru
          _
        // Predicated region
        $region33: #{tpu_custom_call.1} parent=11 // pred_check
          %p382 = pneg %p240
        $region34: #{tpu_custom_call.1} parent=11 // pred_check_branch
          %384 = sbr.rel (%p382) target = $region36
        $region35: #{tpu_custom_call.1} parent=11 // pred_region
          _
        $region36: #{tpu_custom_call.1} parent=11 // pred_fallthru
          _
        // Predicated region
        $region37: #{tpu_custom_call.1} parent=11 // pred_check
          %p385 = pneg %p261
        $region38: #{tpu_custom_call.1} parent=11 // pred_check_branch
          %387 = sbr.rel (%p385) target = $region40
        $region39: #{tpu_custom_call.1} parent=11 // pred_region
          _
        $region40: #{tpu_custom_call.1} parent=11 // pred_fallthru
          _
        // Predicated region
        $region41: #{tpu_custom_call.1} parent=11 // pred_check
          %p388 = pneg %p282
        $region42: #{tpu_custom_call.1} parent=11 // pred_check_branch
          %390 = sbr.rel (%p388) target = $region44
        $region43: #{tpu_custom_call.1} parent=11 // pred_region
          _
        $region44: #{tpu_custom_call.1} parent=11 // pred_fallthru
          _
        // Predicated region
        $region45: #{tpu_custom_call.1} parent=11 // pred_check
          %p391 = pneg %p303
        $region46: #{tpu_custom_call.1} parent=11 // pred_check_branch
          %393 = sbr.rel (%p391) target = $region48
        $region47: #{tpu_custom_call.1} parent=11 // pred_region
          _
        $region48: #{tpu_custom_call.1} parent=11 // pred_fallthru
          _
        // Predicated region
        $region49: #{tpu_custom_call.1} parent=11 // pred_check
          %p394 = pneg %p324
        $region50: #{tpu_custom_call.1} parent=11 // pred_check_branch
          %396 = sbr.rel (%p394) target = $region52
        $region51: #{tpu_custom_call.1} parent=11 // pred_region
          _
        $region52: #{tpu_custom_call.1} parent=11 // pred_fallthru
          _
      $region12: #{tpu_custom_call.1} parent=5 // pred_fallthru
        _
      %p397 = scmp.lt.s32.totalorder %s22, 2
      // Predicated region
      $region53: #{tpu_custom_call.1} parent=5 // pred_check
        %p398 = pneg %p397
      $region54: #{tpu_custom_call.1} parent=5 // pred_check_branch
        %400 = sbr.rel (%p398) target = $region56
      $region55: #{tpu_custom_call.1} parent=5 // pred_region
        // Predicated region
        $region57: #{tpu_custom_call.1} parent=55 // pred_check
          %p401 = pneg %p56
        $region58: #{tpu_custom_call.1} parent=55 // pred_check_branch
          %403 = sbr.rel (%p401) target = $region60
        $region59: #{tpu_custom_call.1} parent=55 // pred_region
          %p404 = scmp.lt.s32.totalorder %s29, 1
          %s405 = scalar_select %p404, %s29, 1
          %p406 = scmp.lt.s32.totalorder %s30, 0
          %s407 = scalar_select %p406, %s30, 0
          %s408 = sadd.s32 %s407, %s405
          %s409 = smul.addr %s408, 8
          %s410 = scalar_lea.vmem %s0, %s409
        $region60: #{tpu_custom_call.1} parent=55 // pred_fallthru
          _
        // Predicated region
        $region61: #{tpu_custom_call.1} parent=55 // pred_check
          %p411 = pneg %p82
        $region62: #{tpu_custom_call.1} parent=55 // pred_check_branch
          %413 = sbr.rel (%p411) target = $region64
        $region63: #{tpu_custom_call.1} parent=55 // pred_region
          %p414 = scmp.lt.s32.totalorder %s29, 1
          %s415 = scalar_select %p414, %s29, 1
          %s416 = smul.addr %s415, 4
          %s417 = smul.addr %s416, 4
          %s418 = scalar_lea.vmem %s1, %s417
        $region64: #{tpu_custom_call.1} parent=55 // pred_fallthru
          _
        // Predicated region
        $region65: #{tpu_custom_call.1} parent=55 // pred_check
          %p419 = pneg %p108
        $region66: #{tpu_custom_call.1} parent=55 // pred_check_branch
          %421 = sbr.rel (%p419) target = $region68
        $region67: #{tpu_custom_call.1} parent=55 // pred_region
          %p422 = scmp.lt.s32.totalorder %s29, 1
          %s423 = scalar_select %p422, %s29, 1
          %s424 = smul.addr %s423, 4
          %s425 = smul.addr %s424, 4
          %s426 = scalar_lea.vmem %s2, %s425
        $region68: #{tpu_custom_call.1} parent=55 // pred_fallthru
          _
      $region56: #{tpu_custom_call.1} parent=5 // pred_fallthru
        _
      %p427 = scmp.le.s32.totalorder 1, %s22
      %p428 = scmp.lt.s32.totalorder %s22, 3
      %p429 = pnand %p427, %p428
      %p430 = pneg %p429
      // Predicated region
      $region69: #{tpu_custom_call.1} parent=5 // pred_check
        _
      $region70: #{tpu_custom_call.1} parent=5 // pred_check_branch
        %432 = sbr.rel (%p429) target = $region72
      $region71: #{tpu_custom_call.1} parent=5 // pred_region
        %s433 = ssub.s32 %s22, 1
        %p434 = scmp.lt.s32.totalorder %s31, 1
        %s435 = scalar_select %p434, %s31, 1
        %p436 = scmp.lt.s32.totalorder %s32, 0
        %s437 = scalar_select %p436, %s32, 0
        %s438 = sadd.s32 %s437, %s435
        %s439 = smul.addr %s438, 8
        %s440 = scalar_lea.vmem %s0, %s439
        %p441 = pneg %p62
        %p442 = pneg %p59
        %p443 = scmp.lt.s32.totalorder %s31, 1
        %s444 = scalar_select %p443, %s31, 1
        %s445 = smul.addr %s444, 4
        %s446 = smul.addr %s445, 4
        %s447 = scalar_lea.vmem %s1, %s446
        %p448 = pneg %p88
        %p449 = pneg %p85
        %p450 = scmp.lt.s32.totalorder %s31, 1
        %s451 = scalar_select %p450, %s31, 1
        %s452 = smul.addr %s451, 4
        %s453 = smul.addr %s452, 4
        %s454 = scalar_lea.vmem %s2, %s453
        %p455 = pneg %p114
        %p456 = pneg %p111
        %p457 = pneg %p135
        %p458 = pneg %p132
        %p459 = pneg %p156
        %p460 = pneg %p153
        %p461 = pneg %p177
        %p462 = pneg %p174
        %p463 = pneg %p198
        %p464 = pneg %p195
        %p465 = pneg %p219
        %p466 = pneg %p216
        %p467 = pneg %p240
        %p468 = pneg %p237
        %p469 = pneg %p261
        %p470 = pneg %p258
        %p471 = pneg %p282
        %p472 = pneg %p279
        %p473 = pneg %p303
        %p474 = pneg %p300
        %p475 = pneg %p324
        %p476 = pneg %p321
        %p477 = pneg %p352
        %p478 = pneg %p349
        %s479 = sand.u32 %s339, 1
        %s480 = scalar_lea.sflag [#allocation4], %s479
        %s481 = sand.u32 %s339, 1
        %s482 = smul.addr %s481, 8
        %s483 = scalar_lea.vmem [#allocation3], %s482
        %p484 = scmp.lt.s32.totalorder %s31, 1
        %s485 = scalar_select %p484, %s31, 1
        %p486 = scmp.lt.s32.totalorder %s32, 0
        %s487 = scalar_select %p486, %s32, 0
        %s488 = sadd.s32 %s487, %s485
        %s489 = smul.addr %s488, 8
        %s490 = scalar_lea.vmem %s0, %s489
        %p491 = scmp.lt.s32.totalorder %s31, 1
        %s492 = scalar_select %p491, %s31, 1
        %s493 = smul.addr %s492, 4
        %s494 = smul.addr %s493, 4
        %s495 = scalar_lea.vmem %s1, %s494
        %p496 = scmp.lt.s32.totalorder %s31, 1
        %s497 = scalar_select %p496, %s31, 1
        %s498 = smul.addr %s497, 4
        %s499 = smul.addr %s498, 4
        %s500 = scalar_lea.vmem %s2, %s499
        %v502 = vld [vmem:[%s490] sm:$0xff]
        %v503 = vpack.c.bf16 %v502, %v502
        %v504 = vlaneseq
        %v505 = vand.u32 %v504, 127
        %vm506 = vcmp.lt.s32.totalorder %v505, 32
        %v507 = vsel %vm506, 1, 0
        %v508 = vcvt.s32.f32 %v507
        %509 = vst [vmem:[#allocation2] sm:$0xff] 0.0
        loop: start=0, step=1, limit=4
        $region73: #{tpu_custom_call.1} parent=71 // loop_pre_header
          _
        $region74: #{tpu_custom_call.1} parent=71 // loop_header
          %s511 = sphi 0, %s515
          %p512 = scmp.ge.s32.totalorder %s511, 4
        $region75: #{tpu_custom_call.1} parent=71 // loop_header_branch
          %514 = sbr.rel (%p512) target = $region79
        $region76: #{tpu_custom_call.1} parent=71 // loop_body
          %s516 = smul.u32 %s511, 16
          %s517 = smul.addr %s516, 4
          %s518 = scalar_lea.vmem %s3, %s517
          %v519 = vld [vmem:[%s518] sm:$0xf]
          %v520 = vld [vmem:[%s518 + $0x4] sm:$0xf]
          %v521 = vld [vmem:[%s518 + $0x8] sm:$0xf]
          %v522 = vld [vmem:[%s518 + $0xc] sm:$0xf]
          %v523 = vld [vmem:[%s518 + $0x10] sm:$0xf]
          %v524 = vld [vmem:[%s518 + $0x14] sm:$0xf]
          %v525 = vld [vmem:[%s518 + $0x18] sm:$0xf]
          %v526 = vld [vmem:[%s518 + $0x1c] sm:$0xf]
          %v527 = vld [vmem:[%s518 + $0x20] sm:$0xf]
          %v528 = vld [vmem:[%s518 + $0x24] sm:$0xf]
          %v529 = vld [vmem:[%s518 + $0x28] sm:$0xf]
          %v530 = vld [vmem:[%s518 + $0x2c] sm:$0xf]
          %v531 = vld [vmem:[%s518 + $0x30] sm:$0xf]
          %v532 = vld [vmem:[%s518 + $0x34] sm:$0xf]
          %v533 = vld [vmem:[%s518 + $0x38] sm:$0xf]
          %v534 = vld [vmem:[%s518 + $0x3c] sm:$0xf]
          %v551 = vunpack.c.l.b16 %v519
          %v552 = vunpack.c.l.b16 %v520
          %v553 = vunpack.c.l.b16 %v521
          %v554 = vunpack.c.l.b16 %v522
          %v555 = vunpack.c.l.b16 %v523
          %v556 = vunpack.c.l.b16 %v524
          %v557 = vunpack.c.l.b16 %v525
          %v558 = vunpack.c.l.b16 %v526
          %v559 = vunpack.c.l.b16 %v527
          %v560 = vunpack.c.l.b16 %v528
          %v561 = vunpack.c.l.b16 %v529
          %v562 = vunpack.c.l.b16 %v530
          %v563 = vunpack.c.l.b16 %v531
          %v564 = vunpack.c.l.b16 %v532
          %v565 = vunpack.c.l.b16 %v533
          %v566 = vunpack.c.l.b16 %v534
          %v567 = vpack.c.b16 %v552, %v551
          %v568 = vpack.c.b16 %v554, %v553
          %v569 = vpack.c.b16 %v556, %v555
          %v570 = vpack.c.b16 %v558, %v557
          %v571 = vpack.c.b16 %v560, %v559
          %v572 = vpack.c.b16 %v562, %v561
          %v573 = vpack.c.b16 %v564, %v563
          %v574 = vpack.c.b16 %v566, %v565
          %583 = vmatprep.subr.bf16.mxu0 0
          %584 = vmatpush1.bf16.msra.mxu0 %v567
          %585 = vmatprep.subr.bf16.mxu0 0
          %586 = vmatpush1.bf16.msra.mxu0 %v568
          %587 = vmatprep.subr.bf16.mxu0 0
          %588 = vmatpush1.bf16.msra.mxu0 %v569
          %589 = vmatprep.subr.bf16.mxu0 0
          %590 = vmatpush1.bf16.msra.mxu0 %v570
          %591 = vmatprep.subr.bf16.mxu0 0
          %592 = vmatpush1.bf16.msra.mxu0 %v571
          %593 = vmatprep.subr.bf16.mxu0 0
          %594 = vmatpush1.bf16.msra.mxu0 %v572
          %595 = vmatprep.subr.bf16.mxu0 0
          %596 = vmatpush1.bf16.msra.mxu0 %v573
          %597 = vmatprep.subr.bf16.mxu0 0
          %598 = vmatpush1.bf16.msra.mxu0 %v574
          %599 = vmatprep.subr.bf16.mxu0 0
          %600 = vmatpush1.bf16.msra.mxu0 0
          %601 = vmatprep.subr.bf16.mxu0 0
          %602 = vmatpush1.bf16.msra.mxu0 0
          %603 = vmatprep.subr.bf16.mxu0 0
          %604 = vmatpush1.bf16.msra.mxu0 0
          %605 = vmatprep.subr.bf16.mxu0 0
          %606 = vmatpush1.bf16.msra.mxu0 0
          %607 = vmatprep.subr.bf16.mxu0 0
          %608 = vmatpush1.bf16.msra.mxu0 0
          %609 = vmatprep.subr.bf16.mxu0 0
          %610 = vmatpush1.bf16.msra.mxu0 0
          %611 = vmatprep.subr.bf16.mxu0 0
          %612 = vmatpush1.bf16.msra.mxu0 0
          %613 = vmatprep.subr.bf16.mxu0 0
          %614 = vmatpush1.bf16.msra.mxu0 0
          %615 = vmatprep.mubr.bf16.mxu0 0
          %616 = vmatmul.mubr.bf16.gmra.mrb[0].mxu0 %v503
          %v617 = vpop.f32.mrb[0].mxu0
          %v618 = vadd.f32 0.0, %v617
          %v619 = vpop.f32.mrb[0].mxu0
          %v620 = vpop.f32.mrb[0].mxu0
          %v621 = vpop.f32.mrb[0].mxu0
          %622 = vdwg.mxu0
          %v623 = vpack.c.bf16 %v618, %v618
          %s624 = smul.addr %s511, 4
          %s625 = scalar_lea.vmem %s495, %s624
          %v626 = vld [vmem:[%s625] sm:$0xf]
          %s627 = smul.addr %s511, 4
          %s628 = scalar_lea.vmem %s500, %s627
          %v629 = vld [vmem:[%s628] sm:$0xf]
          %vm630 = vcmask 64512
          %v632 = vsel %vm630, %v623, 0
          %v635 = vsel %vm630, %v626, 0
          %637 = vmatprep.subr.bf16.mxu0 0
          %638 = vmatpush1.bf16.xpose.msra.mxu0 %v635
          %639 = vmatprep.subr.bf16.mxu0 0
          %640 = vmatpush1.bf16.xpose.msra.mxu0 0
          %641 = vmatprep.subr.bf16.mxu0 0
          %642 = vmatpush1.bf16.xpose.msra.mxu0 0
          %643 = vmatprep.subr.bf16.mxu0 0
          %644 = vmatpush1.bf16.xpose.msra.mxu0 0
          %645 = vmatprep.subr.bf16.mxu0 0
          %646 = vmatpush1.bf16.xpose.msra.mxu0 0
          %647 = vmatprep.subr.bf16.mxu0 0
          %648 = vmatpush1.bf16.xpose.msra.mxu0 0
          %649 = vmatprep.subr.bf16.mxu0 0
          %650 = vmatpush1.bf16.xpose.msra.mxu0 0
          %651 = vmatprep.subr.bf16.mxu0 0
          %652 = vmatpush1.bf16.xpose.msra.mxu0 0
          %653 = vmatprep.subr.bf16.mxu0 0
          %654 = vmatpush1.bf16.xpose.msra.mxu0 0
          %655 = vmatprep.subr.bf16.mxu0 0
          %656 = vmatpush1.bf16.xpose.msra.mxu0 0
          %657 = vmatprep.subr.bf16.mxu0 0
          %658 = vmatpush1.bf16.xpose.msra.mxu0 0
          %659 = vmatprep.subr.bf16.mxu0 0
          %660 = vmatpush1.bf16.xpose.msra.mxu0 0
          %661 = vmatprep.subr.bf16.mxu0 0
          %662 = vmatpush1.bf16.xpose.msra.mxu0 0
          %663 = vmatprep.subr.bf16.mxu0 0
          %664 = vmatpush1.bf16.xpose.msra.mxu0 0
          %665 = vmatprep.subr.bf16.mxu0 0
          %666 = vmatpush1.bf16.xpose.msra.mxu0 0
          %667 = vmatprep.subr.bf16.mxu0 0
          %668 = vmatpush1.bf16.xpose.msra.mxu0 0
          %669 = vmatprep.mubr.bf16.mxu0 0
          %670 = vmatmul.mubr.bf16.gmra.mrb[0].mxu0 %v632
          %v671 = vpop.f32.mrb[0].mxu0
          %v672 = vadd.f32 0.0, %v671
          %v673 = vpop.f32.mrb[0].mxu0
          %v674 = vpop.f32.mrb[0].mxu0
          %v675 = vpop.f32.mrb[0].mxu0
          %676 = vdwg.mxu0
          %v677 = vsel %vm630, %v672, -inf
          %678 = vmax.xlane.f32.xlu0 %v677
          %v679 = vpop.xlane.xlu0 %678
          %v680 = vsub.f32 %v672, %v679
          %v681 = vmul.f32 %v680, 1.442695
          %v682 = vpow.pop %v681
          %v683 = vsel %vm630, %v682, 0.0
          %684 = vadd.xlane.f32.xlu0 %v683
          %v685 = vpop.xlane.xlu0 %684
          %v686 = vrcp.pop %v685
          %v687 = vmul.f32 %v682, %v686
          %v688 = vpack.c.bf16 %v687, %v687
          %v690 = vsel %vm630, %v688, 0
          %vm692 = vcmask 1043456
          %v694 = vsel %vm692, %v629, 0
          %696 = vmatprep.subr.bf16.mxu0 0
          %697 = vmatpush1.bf16.msra.mxu0 %v694
          %698 = vmatprep.subr.bf16.mxu0 0
          %699 = vmatpush1.bf16.msra.mxu0 0
          %700 = vmatprep.subr.bf16.mxu0 0
          %701 = vmatpush1.bf16.msra.mxu0 0
          %702 = vmatprep.subr.bf16.mxu0 0
          %703 = vmatpush1.bf16.msra.mxu0 0
          %704 = vmatprep.subr.bf16.mxu0 0
          %705 = vmatpush1.bf16.msra.mxu0 0
          %706 = vmatprep.subr.bf16.mxu0 0
          %707 = vmatpush1.bf16.msra.mxu0 0
          %708 = vmatprep.subr.bf16.mxu0 0
          %709 = vmatpush1.bf16.msra.mxu0 0
          %710 = vmatprep.subr.bf16.mxu0 0
          %711 = vmatpush1.bf16.msra.mxu0 0
          %712 = vmatprep.subr.bf16.mxu0 0
          %713 = vmatpush1.bf16.msra.mxu0 0
          %714 = vmatprep.subr.bf16.mxu0 0
          %715 = vmatpush1.bf16.msra.mxu0 0
          %716 = vmatprep.subr.bf16.mxu0 0
          %717 = vmatpush1.bf16.msra.mxu0 0
          %718 = vmatprep.subr.bf16.mxu0 0
          %719 = vmatpush1.bf16.msra.mxu0 0
          %720 = vmatprep.subr.bf16.mxu0 0
          %721 = vmatpush1.bf16.msra.mxu0 0
          %722 = vmatprep.subr.bf16.mxu0 0
          %723 = vmatpush1.bf16.msra.mxu0 0
          %724 = vmatprep.subr.bf16.mxu0 0
          %725 = vmatpush1.bf16.msra.mxu0 0
          %726 = vmatprep.subr.bf16.mxu0 0
          %727 = vmatpush1.bf16.msra.mxu0 0
          %728 = vmatprep.mubr.bf16.mxu0 0
          %729 = vmatmul.mubr.bf16.gmra.mrb[0].mxu0 %v690
          %v730 = vpop.f32.mrb[0].mxu0
          %v731 = vadd.f32 0.0, %v730
          %v732 = vpop.f32.mrb[0].mxu0
          %v733 = vpop.f32.mrb[0].mxu0
          %v734 = vpop.f32.mrb[0].mxu0
          %735 = vdwg.mxu0
          %v736 = vld [vmem:[#allocation2] sm:$0xff]
          %v737 = vpack.c.bf16 %v731, %v731
          %s738 = smul.addr %s511, 4
          %s739 = scalar_lea.vmem %s4, %s738
          %v740 = vld [vmem:[%s739] sm:$0xf]
          %v742 = vsel %vm630, %v737, 0
          %v745 = vsel %vm692, %v740, 0
          %747 = vmatprep.subr.bf16.mxu0 0
          %748 = vmatpush1.bf16.msra.mxu0 %v745
          %749 = vmatprep.subr.bf16.mxu0 0
          %750 = vmatpush1.bf16.msra.mxu0 0
          %751 = vmatprep.subr.bf16.mxu0 0
          %752 = vmatpush1.bf16.msra.mxu0 0
          %753 = vmatprep.subr.bf16.mxu0 0
          %754 = vmatpush1.bf16.msra.mxu0 0
          %755 = vmatprep.subr.bf16.mxu0 0
          %756 = vmatpush1.bf16.msra.mxu0 0
          %757 = vmatprep.subr.bf16.mxu0 0
          %758 = vmatpush1.bf16.msra.mxu0 0
          %759 = vmatprep.subr.bf16.mxu0 0
          %760 = vmatpush1.bf16.msra.mxu0 0
          %761 = vmatprep.subr.bf16.mxu0 0
          %762 = vmatpush1.bf16.msra.mxu0 0
          %763 = vmatprep.subr.bf16.mxu0 0
          %764 = vmatpush1.bf16.msra.mxu0 0
          %765 = vmatprep.subr.bf16.mxu0 0
          %766 = vmatpush1.bf16.msra.mxu0 0
          %767 = vmatprep.subr.bf16.mxu0 0
          %768 = vmatpush1.bf16.msra.mxu0 0
          %769 = vmatprep.subr.bf16.mxu0 0
          %770 = vmatpush1.bf16.msra.mxu0 0
          %771 = vmatprep.subr.bf16.mxu0 0
          %772 = vmatpush1.bf16.msra.mxu0 0
          %773 = vmatprep.subr.bf16.mxu0 0
          %774 = vmatpush1.bf16.msra.mxu0 0
          %775 = vmatprep.subr.bf16.mxu0 0
          %776 = vmatpush1.bf16.msra.mxu0 0
          %777 = vmatprep.subr.bf16.mxu0 0
          %778 = vmatpush1.bf16.msra.mxu0 0
          %779 = vmatprep.mubr.bf16.mxu0 0
          %780 = vmatmul.mubr.bf16.gmra.mrb[0].mxu0 %v742
          %v781 = vpop.f32.mrb[0].mxu0
          %v782 = vadd.f32 0.0, %v781
          %v783 = vpop.f32.mrb[0].mxu0
          %v784 = vpop.f32.mrb[0].mxu0
          %v785 = vpop.f32.mrb[0].mxu0
          %786 = vdwg.mxu0
          %v787 = vadd.f32 %v736, %v782
          %788 = vst [vmem:[#allocation2] sm:$0xff] %v787
        $region77: #{tpu_custom_call.1} parent=71 // loop_footer
          %s515 = sadd.s32 1, %s511
        $region78: #{tpu_custom_call.1} parent=71 // loop_footer_branch
          %510 = sbr.rel target = $region74
        $region79: #{tpu_custom_call.1} parent=71 // loop_exit
          _
        %v789 = vld [vmem:[#allocation2] sm:$0xff]
        %v790 = vadd.f32 %v502, %v789
        %v791 = vld [vmem:[%s5] sm:$0x1]
        %v792 = vld [vmem:[%s6] sm:$0x1]
        %793 = vadd.xlane.f32.xlu0 %v790
        %v794 = vpop.xlane.xlu0 %793
        %v795 = vmul.f32 %v794, 0.03125
        %v796 = vsub.f32 %v790, %v795
        %v797 = vmul.f32 %v796, %v508
        %v798 = vmul.f32 %v797, %v797
        %799 = vadd.xlane.f32.xlu0 %v798
        %v800 = vpop.xlane.xlu0 %799
        %v801 = vmul.f32 %v800, 0.03125
        %v802 = vadd.f32 %v801, 1e-05
        %v803 = vrsqrt.pop %v802
        %v804 = vmul.f32 %v797, %v803
        %v806 = vlaneseq
        %v807 = vshrl.u32 %v806, 7
        %v808 = vsub.s32 0, %v807
        %v809 = vrot.slane %v791, %v808
        %v811 = vmul.f32 %v804, %v809
        %v813 = vlaneseq
        %v814 = vshrl.u32 %v813, 7
        %v815 = vsub.s32 0, %v814
        %v816 = vrot.slane %v792, %v815
        %v818 = vadd.f32 %v811, %v816
        %v819 = vpack.c.bf16 %v818, %v818
        %v820 = vld [vmem:[%s7] sm:$0xf]
        %v821 = vld [vmem:[%s7 + $0x4] sm:$0xf]
        %v822 = vld [vmem:[%s7 + $0x8] sm:$0xf]
        %v823 = vld [vmem:[%s7 + $0xc] sm:$0xf]
        %v824 = vld [vmem:[%s7 + $0x10] sm:$0xf]
        %v825 = vld [vmem:[%s7 + $0x14] sm:$0xf]
        %v826 = vld [vmem:[%s7 + $0x18] sm:$0xf]
        %v827 = vld [vmem:[%s7 + $0x1c] sm:$0xf]
        %v828 = vld [vmem:[%s7 + $0x20] sm:$0xf]
        %v829 = vld [vmem:[%s7 + $0x24] sm:$0xf]
        %v830 = vld [vmem:[%s7 + $0x28] sm:$0xf]
        %v831 = vld [vmem:[%s7 + $0x2c] sm:$0xf]
        %v832 = vld [vmem:[%s7 + $0x30] sm:$0xf]
        %v833 = vld [vmem:[%s7 + $0x34] sm:$0xf]
        %v834 = vld [vmem:[%s7 + $0x38] sm:$0xf]
        %v835 = vld [vmem:[%s7 + $0x3c] sm:$0xf]
        %v836 = vld [vmem:[%s8] sm:$0x1]
        %v838 = vlaneseq
        %v839 = vshrl.u32 %v838, 7
        %v840 = vsub.s32 0, %v839
        %v841 = vrot.slane %v836, %v840
        %v859 = vunpack.c.l.b16 %v820
        %v860 = vunpack.c.l.b16 %v821
        %v861 = vunpack.c.l.b16 %v822
        %v862 = vunpack.c.l.b16 %v823
        %v863 = vunpack.c.l.b16 %v824
        %v864 = vunpack.c.l.b16 %v825
        %v865 = vunpack.c.l.b16 %v826
        %v866 = vunpack.c.l.b16 %v827
        %v867 = vunpack.c.l.b16 %v828
        %v868 = vunpack.c.l.b16 %v829
        %v869 = vunpack.c.l.b16 %v830
        %v870 = vunpack.c.l.b16 %v831
        %v871 = vunpack.c.l.b16 %v832
        %v872 = vunpack.c.l.b16 %v833
        %v873 = vunpack.c.l.b16 %v834
        %v874 = vunpack.c.l.b16 %v835
        %v875 = vpack.c.b16 %v860, %v859
        %v876 = vpack.c.b16 %v862, %v861
        %v877 = vpack.c.b16 %v864, %v863
        %v878 = vpack.c.b16 %v866, %v865
        %v879 = vpack.c.b16 %v868, %v867
        %v880 = vpack.c.b16 %v870, %v869
        %v881 = vpack.c.b16 %v872, %v871
        %v882 = vpack.c.b16 %v874, %v873
        %891 = vmatprep.subr.bf16.mxu0 0
        %892 = vmatpush1.bf16.msra.mxu0 %v875
        %893 = vmatprep.subr.bf16.mxu0 0
        %894 = vmatpush1.bf16.msra.mxu0 %v876
        %895 = vmatprep.subr.bf16.mxu0 0
        %896 = vmatpush1.bf16.msra.mxu0 %v877
        %897 = vmatprep.subr.bf16.mxu0 0
        %898 = vmatpush1.bf16.msra.mxu0 %v878
        %899 = vmatprep.subr.bf16.mxu0 0
        %900 = vmatpush1.bf16.msra.mxu0 %v879
        %901 = vmatprep.subr.bf16.mxu0 0
        %902 = vmatpush1.bf16.msra.mxu0 %v880
        %903 = vmatprep.subr.bf16.mxu0 0
        %904 = vmatpush1.bf16.msra.mxu0 %v881
        %905 = vmatprep.subr.bf16.mxu0 0
        %906 = vmatpush1.bf16.msra.mxu0 %v882
        %907 = vmatprep.subr.bf16.mxu0 0
        %908 = vmatpush1.bf16.msra.mxu0 0
        %909 = vmatprep.subr.bf16.mxu0 0
        %910 = vmatpush1.bf16.msra.mxu0 0
        %911 = vmatprep.subr.bf16.mxu0 0
        %912 = vmatpush1.bf16.msra.mxu0 0
        %913 = vmatprep.subr.bf16.mxu0 0
        %914 = vmatpush1.bf16.msra.mxu0 0
        %915 = vmatprep.subr.bf16.mxu0 0
        %916 = vmatpush1.bf16.msra.mxu0 0
        %917 = vmatprep.subr.bf16.mxu0 0
        %918 = vmatpush1.bf16.msra.mxu0 0
        %919 = vmatprep.subr.bf16.mxu0 0
        %920 = vmatpush1.bf16.msra.mxu0 0
        %921 = vmatprep.subr.bf16.mxu0 0
        %922 = vmatpush1.bf16.msra.mxu0 0
        %923 = vmatprep.mubr.bf16.mxu0 0
        %924 = vmatmul.mubr.bf16.gmra.mrb[0].mxu0 %v819
        %v925 = vpop.f32.mrb[0].mxu0
        %v926 = vadd.f32 %v841, %v925
        %v927 = vpop.f32.mrb[0].mxu0
        %v928 = vpop.f32.mrb[0].mxu0
        %v929 = vpop.f32.mrb[0].mxu0
        %930 = vdwg.mxu0
        %v931 = vmul.f32 %v926, 0.5
        %v932 = vmul.f32 %v926, 0.044715
        %v933 = vmul.f32 %v932, %v926
        %v934 = vmul.f32 %v933, %v926
        %v935 = vadd.f32 %v926, %v934
        %v936 = vmul.f32 %v935, 0.7978846
        %v937 = vtanh.pop %v936
        %v938 = vadd.f32 %v937, 1.0
        %v939 = vmul.f32 %v931, %v938
        %v940 = vpack.c.bf16 %v939, %v939
        %v941 = vld [vmem:[%s9] sm:$0xf]
        %v942 = vld [vmem:[%s9 + $0x4] sm:$0xf]
        %v943 = vld [vmem:[%s9 + $0x8] sm:$0xf]
        %v944 = vld [vmem:[%s9 + $0xc] sm:$0xf]
        %v945 = vld [vmem:[%s9 + $0x10] sm:$0xf]
        %v946 = vld [vmem:[%s9 + $0x14] sm:$0xf]
        %v947 = vld [vmem:[%s9 + $0x18] sm:$0xf]
        %v948 = vld [vmem:[%s9 + $0x1c] sm:$0xf]
        %v949 = vld [vmem:[%s9 + $0x20] sm:$0xf]
        %v950 = vld [vmem:[%s9 + $0x24] sm:$0xf]
        %v951 = vld [vmem:[%s9 + $0x28] sm:$0xf]
        %v952 = vld [vmem:[%s9 + $0x2c] sm:$0xf]
        %v953 = vld [vmem:[%s9 + $0x30] sm:$0xf]
        %v954 = vld [vmem:[%s9 + $0x34] sm:$0xf]
        %v955 = vld [vmem:[%s9 + $0x38] sm:$0xf]
        %v956 = vld [vmem:[%s9 + $0x3c] sm:$0xf]
        %v957 = vld [vmem:[%s10] sm:$0x1]
        %v959 = vlaneseq
        %v960 = vshrl.u32 %v959, 7
        %v961 = vsub.s32 0, %v960
        %v962 = vrot.slane %v957, %v961
        %v980 = vunpack.c.l.b16 %v941
        %v981 = vunpack.c.l.b16 %v942
        %v982 = vunpack.c.l.b16 %v943
        %v983 = vunpack.c.l.b16 %v944
        %v984 = vunpack.c.l.b16 %v945
        %v985 = vunpack.c.l.b16 %v946
        %v986 = vunpack.c.l.b16 %v947
        %v987 = vunpack.c.l.b16 %v948
        %v988 = vunpack.c.l.b16 %v949
        %v989 = vunpack.c.l.b16 %v950
        %v990 = vunpack.c.l.b16 %v951
        %v991 = vunpack.c.l.b16 %v952
        %v992 = vunpack.c.l.b16 %v953
        %v993 = vunpack.c.l.b16 %v954
        %v994 = vunpack.c.l.b16 %v955
        %v995 = vunpack.c.l.b16 %v956
        %v996 = vpack.c.b16 %v981, %v980
        %v997 = vpack.c.b16 %v983, %v982
        %v998 = vpack.c.b16 %v985, %v984
        %v999 = vpack.c.b16 %v987, %v986
        %v1000 = vpack.c.b16 %v989, %v988
        %v1001 = vpack.c.b16 %v991, %v990
        %v1002 = vpack.c.b16 %v993, %v992
        %v1003 = vpack.c.b16 %v995, %v994
        %1012 = vmatprep.subr.bf16.mxu0 0
        %1013 = vmatpush1.bf16.msra.mxu0 %v996
        %1014 = vmatprep.subr.bf16.mxu0 0
        %1015 = vmatpush1.bf16.msra.mxu0 %v997
        %1016 = vmatprep.subr.bf16.mxu0 0
        %1017 = vmatpush1.bf16.msra.mxu0 %v998
        %1018 = vmatprep.subr.bf16.mxu0 0
        %1019 = vmatpush1.bf16.msra.mxu0 %v999
        %1020 = vmatprep.subr.bf16.mxu0 0
        %1021 = vmatpush1.bf16.msra.mxu0 %v1000
        %1022 = vmatprep.subr.bf16.mxu0 0
        %1023 = vmatpush1.bf16.msra.mxu0 %v1001
        %1024 = vmatprep.subr.bf16.mxu0 0
        %1025 = vmatpush1.bf16.msra.mxu0 %v1002
        %1026 = vmatprep.subr.bf16.mxu0 0
        %1027 = vmatpush1.bf16.msra.mxu0 %v1003
        %1028 = vmatprep.subr.bf16.mxu0 0
        %1029 = vmatpush1.bf16.msra.mxu0 0
        %1030 = vmatprep.subr.bf16.mxu0 0
        %1031 = vmatpush1.bf16.msra.mxu0 0
        %1032 = vmatprep.subr.bf16.mxu0 0
        %1033 = vmatpush1.bf16.msra.mxu0 0
        %1034 = vmatprep.subr.bf16.mxu0 0
        %1035 = vmatpush1.bf16.msra.mxu0 0
        %1036 = vmatprep.subr.bf16.mxu0 0
        %1037 = vmatpush1.bf16.msra.mxu0 0
        %1038 = vmatprep.subr.bf16.mxu0 0
        %1039 = vmatpush1.bf16.msra.mxu0 0
        %1040 = vmatprep.subr.bf16.mxu0 0
        %1041 = vmatpush1.bf16.msra.mxu0 0
        %1042 = vmatprep.subr.bf16.mxu0 0
        %1043 = vmatpush1.bf16.msra.mxu0 0
        %1044 = vmatprep.mubr.bf16.mxu0 0
        %1045 = vmatmul.mubr.bf16.gmra.mrb[0].mxu0 %v940
        %v1046 = vpop.f32.mrb[0].mxu0
        %v1047 = vadd.f32 %v962, %v1046
        %v1048 = vpop.f32.mrb[0].mxu0
        %v1049 = vpop.f32.mrb[0].mxu0
        %v1050 = vpop.f32.mrb[0].mxu0
        %1051 = vdwg.mxu0
        %v1052 = vadd.f32 %v818, %v1047
        %v1053 = vld [vmem:[%s11] sm:$0x1]
        %v1054 = vld [vmem:[%s12] sm:$0x1]
        %1055 = vadd.xlane.f32.xlu0 %v1052
        %v1056 = vpop.xlane.xlu0 %1055
        %v1057 = vmul.f32 %v1056, 0.03125
        %v1058 = vsub.f32 %v1052, %v1057
        %v1059 = vmul.f32 %v1058, %v508
        %v1060 = vmul.f32 %v1059, %v1059
        %1061 = vadd.xlane.f32.xlu0 %v1060
        %v1062 = vpop.xlane.xlu0 %1061
        %v1063 = vmul.f32 %v1062, 0.03125
        %v1064 = vadd.f32 %v1063, 1e-05
        %v1065 = vrsqrt.pop %v1064
        %v1066 = vmul.f32 %v1059, %v1065
        %v1068 = vlaneseq
        %v1069 = vshrl.u32 %v1068, 7
        %v1070 = vsub.s32 0, %v1069
        %v1071 = vrot.slane %v1053, %v1070
        %v1073 = vmul.f32 %v1066, %v1071
        %v1075 = vlaneseq
        %v1076 = vshrl.u32 %v1075, 7
        %v1077 = vsub.s32 0, %v1076
        %v1078 = vrot.slane %v1054, %v1077
        %v1080 = vadd.f32 %v1073, %v1078
        %1081 = vst [vmem:[%s483] sm:$0xff] %v1080
        %s1082 = sand.u32 %s339, 1
        %s1083 = scalar_lea.sflag [#allocation4], %s1082
        %s1084 = sand.u32 %s339, 1
        %s1085 = smul.addr %s1084, 8
        %s1086 = scalar_lea.vmem [#allocation3], %s1085
        // Predicated region
        $region80: #{tpu_custom_call.1} parent=71 // pred_check
          %p1087 = pneg %p349
        $region81: #{tpu_custom_call.1} parent=71 // pred_check_branch
          %1089 = sbr.rel (%p1087) target = $region83
        $region82: #{tpu_custom_call.1} parent=71 // pred_region
          %s1091 = ssub.s32 128, 128
          %1092 = vsyncadd %s1083, %s1091
          %s1093 = sadd.s32 %s32, %s31
          %s1094 = smul.addr %s1093, 128
          %s1095 = scalar_lea.hbm %s13, %s1094
          %s1097 = sshll.u32 %s1086, 4
          %s1098 = int_to_ptr.vmem [resolvable:$true] %s1097
          %1100 = dma.vmem_to_hbm [thread:$0]  %s1098, 128, %s1095, %s1083
        $region83: #{tpu_custom_call.1} parent=71 // pred_fallthru
          _
      $region72: #{tpu_custom_call.1} parent=5 // pred_fallthru
        _
      %p1101 = scmp.le.s32.totalorder 2, %s22
      // Predicated region
      $region84: #{tpu_custom_call.1} parent=5 // pred_check
        %p1102 = pneg %p1101
      $region85: #{tpu_custom_call.1} parent=5 // pred_check_branch
        %1104 = sbr.rel (%p1102) target = $region87
      $region86: #{tpu_custom_call.1} parent=5 // pred_region
        %s1105 = ssub.s32 %s22, 2
        // Predicated region
        $region88: #{tpu_custom_call.1} parent=86 // pred_check
          %p1106 = pneg %p355
        $region89: #{tpu_custom_call.1} parent=86 // pred_check_branch
          %1108 = sbr.rel (%p1106) target = $region91
        $region90: #{tpu_custom_call.1} parent=86 // pred_region
          %s1109 = sand.u32 %s340, 1
          %s1110 = scalar_lea.sflag [#allocation4], %s1109
          %s1111 = sand.u32 %s340, 1
          %s1112 = smul.addr %s1111, 8
          %s1113 = scalar_lea.vmem [#allocation3], %s1112
          %1114 = dma.done %s1110, 128
        $region91: #{tpu_custom_call.1} parent=86 // pred_fallthru
          _
      $region87: #{tpu_custom_call.1} parent=5 // pred_fallthru
        _
    $region6: #{tpu_custom_call.1} parent=1 // loop_footer
      %s26 = sadd.s32 1, %s22
    $region7: #{tpu_custom_call.1} parent=1 // loop_footer_branch
      %21 = sbr.rel target = $region3
    $region8: #{tpu_custom_call.1} parent=1 // loop_exit
      _
    %1115 = vsyncpa [#allocation4], 1
    %s1116 = scalar_lea.sflag [#allocation4], 1
    %1117 = vsyncpa %s1116, 1

// kernel: tpu_custom_call.1
$region0: #{tpu_custom_call.1}
  #allocation0 [shape = 'u32[]', space=smem, size = 0x4, offset = 0x4, fixed_abs, tag = 'smem constant byte address 0x4 - core index']
  #allocation1 [shape = 'u32[144,128]{1,0:T(1,128)}', space=vmem, size = 0x12000, scoped, tag = 'internal scratch']
  #allocation2 [shape = 'f32[8,128]{1,0:T(8,128)}', space=vmem, size = 0x1000, scoped, tag = 'scratch operand']
  %s0 = inlined_call_operand.vmem [shape: f32[2,8,128], index: 0, kind: input, shape index: {}]
  %s1 = inlined_call_operand.vmem [shape: bf16[2,4,8,8], index: 1, kind: input, shape index: {}]
  %s2 = inlined_call_operand.vmem [shape: bf16[2,4,8,8], index: 2, kind: input, shape index: {}]
  %s3 = inlined_call_operand.vmem [shape: bf16[4,128,8], index: 3, kind: input, shape index: {}]
  %s4 = inlined_call_operand.vmem [shape: bf16[4,8,128], index: 4, kind: input, shape index: {}]
  %s5 = inlined_call_operand.vmem [shape: f32[1,128], index: 5, kind: input, shape index: {}]
  %s6 = inlined_call_operand.vmem [shape: f32[1,128], index: 6, kind: input, shape index: {}]
  %s7 = inlined_call_operand.vmem [shape: bf16[128,128], index: 7, kind: input, shape index: {}]
  %s8 = inlined_call_operand.vmem [shape: f32[1,128], index: 8, kind: input, shape index: {}]
  %s9 = inlined_call_operand.vmem [shape: bf16[128,128], index: 9, kind: input, shape index: {}]
  %s10 = inlined_call_operand.vmem [shape: f32[1,128], index: 10, kind: input, shape index: {}]
  %s11 = inlined_call_operand.vmem [shape: f32[1,128], index: 11, kind: input, shape index: {}]
  %s12 = inlined_call_operand.vmem [shape: f32[1,128], index: 12, kind: input, shape index: {}]
  %s13 = inlined_call_operand.hbm [shape: f32[2,8,128], index: 13, kind: output, shape index: {}]
  %s14 = sld [smem:[#allocation0]]
  $region92: #{tpu_custom_call.1} parent=0
    _
  %s16 = ssub.s32 1, %s14
  %s17 = scalar_select 0, %s16, %s14
  $region1: #{tpu_custom_call.1} parent=0
    #allocation3 [shape = 'u8[8192]{0}', space=vmem, size = 0x2000, scoped, tag = 'output window, operand 0']
    #allocation4 [shape = 's32[2]{0}', space=sflag, size = 0x8, scoped, tag = 'scoped memory for tpu_custom_call.1']
    %18 = vsyncpa [#allocation4], 0
    %s19 = scalar_lea.sflag [#allocation4], 1
    %20 = vsyncpa %s19, 0
    loop: start=0, step=1, limit=4
    $region2: #{tpu_custom_call.1} parent=1 // loop_pre_header
      _
    $region3: #{tpu_custom_call.1} parent=1 // loop_header
      %s22 = sphi 0, %s26
      %p23 = scmp.ge.s32.totalorder %s22, 4
      %s29 = sphi 0, %s41
      %s30 = sphi 0, %s37
      %s31 = sphi 0, %s29
      %s32 = sphi 0, %s30
      %s33 = sphi 0, %s31
      %s34 = sphi 0, %s32
      %s46 = sphi 0, %s48
      %s49 = sphi 0, %s46
      %s50 = sphi 0, %s49
      %s66 = sphi 0, %s50
      %s72 = sphi 0, %s74
      %s75 = sphi 0, %s72
      %s76 = sphi 0, %s75
      %s92 = sphi 0, %s76
      %s98 = sphi 0, %s100
      %s101 = sphi 0, %s98
      %s102 = sphi 0, %s101
      %s118 = sphi 0, %s102
      %s122 = sphi 0, %s122
      %s124 = sphi 0, %s122
      %s125 = sphi 0, %s124
      %s139 = sphi 0, %s125
      %s143 = sphi 0, %s143
      %s145 = sphi 0, %s143
      %s146 = sphi 0, %s145
      %s160 = sphi 0, %s146
      %s164 = sphi 0, %s164
      %s166 = sphi 0, %s164
      %s167 = sphi 0, %s166
      %s181 = sphi 0, %s167
      %s185 = sphi 0, %s185
      %s187 = sphi 0, %s185
      %s188 = sphi 0, %s187
      %s202 = sphi 0, %s188
      %s206 = sphi 0, %s206
      %s208 = sphi 0, %s206
      %s209 = sphi 0, %s208
      %s223 = sphi 0, %s209
      %s227 = sphi 0, %s227
      %s229 = sphi 0, %s227
      %s230 = sphi 0, %s229
      %s244 = sphi 0, %s230
      %s248 = sphi 0, %s248
      %s250 = sphi 0, %s248
      %s251 = sphi 0, %s250
      %s265 = sphi 0, %s251
      %s269 = sphi 0, %s269
      %s271 = sphi 0, %s269
      %s272 = sphi 0, %s271
      %s286 = sphi 0, %s272
      %s290 = sphi 0, %s290
      %s292 = sphi 0, %s290
      %s293 = sphi 0, %s292
      %s307 = sphi 0, %s293
      %s311 = sphi 0, %s311
      %s313 = sphi 0, %s311
      %s314 = sphi 0, %s313
      %s328 = sphi 0, %s314
      %s336 = sphi 0, %s338
      %s339 = sphi 0, %s336
      %s340 = sphi 0, %s339
      %s356 = sphi 0, %s340
    $region4: #{tpu_custom_call.1} parent=1 // loop_header_branch
      %25 = sbr.rel (%p23) target = $region8
    $region5: #{tpu_custom_call.1} parent=1 // loop_body
      %s27 = ssub.s32 %s22, 1
      %s28 = ssub.s32 %s22, 2
      %s35 = sadd.s32 1, %s30
      %p36 = scmp.ge.s32.totalorder %s35, 1
      %s37 = scalar_select %p36, 0, %s35
      %s38 = sadd.s32 1, %s29
      %s39 = scalar_select %p36, %s38, %s29
      %p40 = scmp.ge.s32.totalorder %s39, 2
      %s41 = scalar_select %p40, 0, %s39
      %s42 = ssub.s32 %s29, %s41
      %s43 = ssub.s32 %s30, %s37
      %s44 = sor.u32 %s42, %s43
      %p45 = scmp.eq.s32.totalorder %s44, 0
      %s47 = sadd.s32 %s46, 1
      %s48 = scalar_select %p45, %s46, %s47
      %p51 = pneg %p45
      %p52 = scmp.eq.s32.totalorder %s22, 1
      %p53 = por %p51, %p52
      %p54 = scmp.ne.s32.totalorder %s46, %s49
      %p55 = scmp.eq.s32.totalorder %s22, 0
      %p56 = por %p54, %p55
      %p57 = scmp.ne.s32.totalorder %s46, %s49
      %p58 = scmp.eq.s32.totalorder %s27, 1
      %p59 = por %p57, %p58
      %p60 = scmp.ne.s32.totalorder %s49, %s50
      %p61 = scmp.eq.s32.totalorder %s27, 0
      %p62 = por %p60, %p61
      %p63 = scmp.ne.s32.totalorder %s49, %s50
      %p64 = scmp.eq.s32.totalorder %s28, 1
      %p65 = por %p63, %p64
      %p67 = scmp.ne.s32.totalorder %s50, %s66
      %p68 = scmp.eq.s32.totalorder %s28, 0
      %p69 = por %p67, %p68
      %s70 = ssub.s32 %s29, %s41
      %p71 = scmp.eq.s32.totalorder %s70, 0
      %s73 = sadd.s32 %s72, 1
      %s74 = scalar_select %p71, %s72, %s73
      %p77 = pneg %p71
      %p78 = scmp.eq.s32.totalorder %s22, 1
      %p79 = por %p77, %p78
      %p80 = scmp.ne.s32.totalorder %s72, %s75
      %p81 = scmp.eq.s32.totalorder %s22, 0
      %p82 = por %p80, %p81
      %p83 = scmp.ne.s32.totalorder %s72, %s75
      %p84 = scmp.eq.s32.totalorder %s27, 1
      %p85 = por %p83, %p84
      %p86 = scmp.ne.s32.totalorder %s75, %s76
      %p87 = scmp.eq.s32.totalorder %s27, 0
      %p88 = por %p86, %p87
      %p89 = scmp.ne.s32.totalorder %s75, %s76
      %p90 = scmp.eq.s32.totalorder %s28, 1
      %p91 = por %p89, %p90
      %p93 = scmp.ne.s32.totalorder %s76, %s92
      %p94 = scmp.eq.s32.totalorder %s28, 0
      %p95 = por %p93, %p94
      %s96 = ssub.s32 %s29, %s41
      %p97 = scmp.eq.s32.totalorder %s96, 0
      %s99 = sadd.s32 %s98, 1
      %s100 = scalar_select %p97, %s98, %s99
      %p103 = pneg %p97
      %p104 = scmp.eq.s32.totalorder %s22, 1
      %p105 = por %p103, %p104
      %p106 = scmp.ne.s32.totalorder %s98, %s101
      %p107 = scmp.eq.s32.totalorder %s22, 0
      %p108 = por %p106, %p107
      %p109 = scmp.ne.s32.totalorder %s98, %s101
      %p110 = scmp.eq.s32.totalorder %s27, 1
      %p111 = por %p109, %p110
      %p112 = scmp.ne.s32.totalorder %s101, %s102
      %p113 = scmp.eq.s32.totalorder %s27, 0
      %p114 = por %p112, %p113
      %p115 = scmp.ne.s32.totalorder %s101, %s102
      %p116 = scmp.eq.s32.totalorder %s28, 1
      %p117 = por %p115, %p116
      %p119 = scmp.ne.s32.totalorder %s102, %s118
      %p120 = scmp.eq.s32.totalorder %s28, 0
      %p121 = por %p119, %p120
      %s123 = sadd.s32 %s122, 1
      %p126 = scmp.eq.s32.totalorder %s22, 1
      %p127 = scmp.ne.s32.totalorder %s122, %s124
      %p128 = scmp.eq.s32.totalorder %s22, 0
      %p129 = por %p127, %p128
      %p130 = scmp.ne.s32.totalorder %s122, %s124
      %p131 = scmp.eq.s32.totalorder %s27, 1
      %p132 = por %p130, %p131
      %p133 = scmp.ne.s32.totalorder %s124, %s125
      %p134 = scmp.eq.s32.totalorder %s27, 0
      %p135 = por %p133, %p134
      %p136 = scmp.ne.s32.totalorder %s124, %s125
      %p137 = scmp.eq.s32.totalorder %s28, 1
      %p138 = por %p136, %p137
      %p140 = scmp.ne.s32.totalorder %s125, %s139
      %p141 = scmp.eq.s32.totalorder %s28, 0
      %p142 = por %p140, %p141
      %s144 = sadd.s32 %s143, 1
      %p147 = scmp.eq.s32.totalorder %s22, 1
      %p148 = scmp.ne.s32.totalorder %s143, %s145
      %p149 = scmp.eq.s32.totalorder %s22, 0
      %p150 = por %p148, %p149
      %p151 = scmp.ne.s32.totalorder %s143, %s145
      %p152 = scmp.eq.s32.totalorder %s27, 1
      %p153 = por %p151, %p152
      %p154 = scmp.ne.s32.totalorder %s145, %s146
      %p155 = scmp.eq.s32.totalorder %s27, 0
      %p156 = por %p154, %p155
      %p157 = scmp.ne.s32.totalorder %s145, %s146
      %p158 = scmp.eq.s32.totalorder %s28, 1
      %p159 = por %p157, %p158
      %p161 = scmp.ne.s32.totalorder %s146, %s160
      %p162 = scmp.eq.s32.totalorder %s28, 0
      %p163 = por %p161, %p162
      %s165 = sadd.s32 %s164, 1
      %p168 = scmp.eq.s32.totalorder %s22, 1
      %p169 = scmp.ne.s32.totalorder %s164, %s166
      %p170 = scmp.eq.s32.totalorder %s22, 0
      %p171 = por %p169, %p170
      %p172 = scmp.ne.s32.totalorder %s164, %s166
      %p173 = scmp.eq.s32.totalorder %s27, 1
      %p174 = por %p172, %p173
      %p175 = scmp.ne.s32.totalorder %s166, %s167
      %p176 = scmp.eq.s32.totalorder %s27, 0
      %p177 = por %p175, %p176
      %p178 = scmp.ne.s32.totalorder %s166, %s167
      %p179 = scmp.eq.s32.totalorder %s28, 1
      %p180 = por %p178, %p179
      %p182 = scmp.ne.s32.totalorder %s167, %s181
      %p183 = scmp.eq.s32.totalorder %s28, 0
      %p184 = por %p182, %p183
      %s186 = sadd.s32 %s185, 1
      %p189 = scmp.eq.s32.totalorder %s22, 1
      %p190 = scmp.ne.s32.totalorder %s185, %s187
      %p191 = scmp.eq.s32.totalorder %s22, 0
      %p192 = por %p190, %p191
      %p193 = scmp.ne.s32.totalorder %s185, %s187
      %p194 = scmp.eq.s32.totalorder %s27, 1
      %p195 = por %p193, %p194
      %p196 = scmp.ne.s32.totalorder %s187, %s188
      %p197 = scmp.eq.s32.totalorder %s27, 0
      %p198 = por %p196, %p197
      %p199 = scmp.ne.s32.totalorder %s187, %s188
      %p200 = scmp.eq.s32.totalorder %s28, 1
      %p201 = por %p199, %p200
      %p203 = scmp.ne.s32.totalorder %s188, %s202
      %p204 = scmp.eq.s32.totalorder %s28, 0
      %p205 = por %p203, %p204
      %s207 = sadd.s32 %s206, 1
      %p210 = scmp.eq.s32.totalorder %s22, 1
      %p211 = scmp.ne.s32.totalorder %s206, %s208
      %p212 = scmp.eq.s32.totalorder %s22, 0
      %p213 = por %p211, %p212
      %p214 = scmp.ne.s32.totalorder %s206, %s208
      %p215 = scmp.eq.s32.totalorder %s27, 1
      %p216 = por %p214, %p215
      %p217 = scmp.ne.s32.totalorder %s208, %s209
      %p218 = scmp.eq.s32.totalorder %s27, 0
      %p219 = por %p217, %p218
      %p220 = scmp.ne.s32.totalorder %s208, %s209
      %p221 = scmp.eq.s32.totalorder %s28, 1
      %p222 = por %p220, %p221
      %p224 = scmp.ne.s32.totalorder %s209, %s223
      %p225 = scmp.eq.s32.totalorder %s28, 0
      %p226 = por %p224, %p225
      %s228 = sadd.s32 %s227, 1
      %p231 = scmp.eq.s32.totalorder %s22, 1
      %p232 = scmp.ne.s32.totalorder %s227, %s229
      %p233 = scmp.eq.s32.totalorder %s22, 0
      %p234 = por %p232, %p233
      %p235 = scmp.ne.s32.totalorder %s227, %s229
      %p236 = scmp.eq.s32.totalorder %s27, 1
      %p237 = por %p235, %p236
      %p238 = scmp.ne.s32.totalorder %s229, %s230
      %p239 = scmp.eq.s32.totalorder %s27, 0
      %p240 = por %p238, %p239
      %p241 = scmp.ne.s32.totalorder %s229, %s230
      %p242 = scmp.eq.s32.totalorder %s28, 1
      %p243 = por %p241, %p242
      %p245 = scmp.ne.s32.totalorder %s230, %s244
      %p246 = scmp.eq.s32.totalorder %s28, 0
      %p247 = por %p245, %p246
      %s249 = sadd.s32 %s248, 1
      %p252 = scmp.eq.s32.totalorder %s22, 1
      %p253 = scmp.ne.s32.totalorder %s248, %s250
      %p254 = scmp.eq.s32.totalorder %s22, 0
      %p255 = por %p253, %p254
      %p256 = scmp.ne.s32.totalorder %s248, %s250
      %p257 = scmp.eq.s32.totalorder %s27, 1
      %p258 = por %p256, %p257
      %p259 = scmp.ne.s32.totalorder %s250, %s251
      %p260 = scmp.eq.s32.totalorder %s27, 0
      %p261 = por %p259, %p260
      %p262 = scmp.ne.s32.totalorder %s250, %s251
      %p263 = scmp.eq.s32.totalorder %s28, 1
      %p264 = por %p262, %p263
      %p266 = scmp.ne.s32.totalorder %s251, %s265
      %p267 = scmp.eq.s32.totalorder %s28, 0
      %p268 = por %p266, %p267
      %s270 = sadd.s32 %s269, 1
      %p273 = scmp.eq.s32.totalorder %s22, 1
      %p274 = scmp.ne.s32.totalorder %s269, %s271
      %p275 = scmp.eq.s32.totalorder %s22, 0
      %p276 = por %p274, %p275
      %p277 = scmp.ne.s32.totalorder %s269, %s271
      %p278 = scmp.eq.s32.totalorder %s27, 1
      %p279 = por %p277, %p278
      %p280 = scmp.ne.s32.totalorder %s271, %s272
      %p281 = scmp.eq.s32.totalorder %s27, 0
      %p282 = por %p280, %p281
      %p283 = scmp.ne.s32.totalorder %s271, %s272
      %p284 = scmp.eq.s32.totalorder %s28, 1
      %p285 = por %p283, %p284
      %p287 = scmp.ne.s32.totalorder %s272, %s286
      %p288 = scmp.eq.s32.totalorder %s28, 0
      %p289 = por %p287, %p288
      %s291 = sadd.s32 %s290, 1
      %p294 = scmp.eq.s32.totalorder %s22, 1
      %p295 = scmp.ne.s32.totalorder %s290, %s292
      %p296 = scmp.eq.s32.totalorder %s22, 0
      %p297 = por %p295, %p296
      %p298 = scmp.ne.s32.totalorder %s290, %s292
      %p299 = scmp.eq.s32.totalorder %s27, 1
      %p300 = por %p298, %p299
      %p301 = scmp.ne.s32.totalorder %s292, %s293
      %p302 = scmp.eq.s32.totalorder %s27, 0
      %p303 = por %p301, %p302
      %p304 = scmp.ne.s32.totalorder %s292, %s293
      %p305 = scmp.eq.s32.totalorder %s28, 1
      %p306 = por %p304, %p305
      %p308 = scmp.ne.s32.totalorder %s293, %s307
      %p309 = scmp.eq.s32.totalorder %s28, 0
      %p310 = por %p308, %p309
      %s312 = sadd.s32 %s311, 1
      %p315 = scmp.eq.s32.totalorder %s22, 1
      %p316 = scmp.ne.s32.totalorder %s311, %s313
      %p317 = scmp.eq.s32.totalorder %s22, 0
      %p318 = por %p316, %p317
      %p319 = scmp.ne.s32.totalorder %s311, %s313
      %p320 = scmp.eq.s32.totalorder %s27, 1
      %p321 = por %p319, %p320
      %p322 = scmp.ne.s32.totalorder %s313, %s314
      %p323 = scmp.eq.s32.totalorder %s27, 0
      %p324 = por %p322, %p323
      %p325 = scmp.ne.s32.totalorder %s313, %s314
      %p326 = scmp.eq.s32.totalorder %s28, 1
      %p327 = por %p325, %p326
      %p329 = scmp.ne.s32.totalorder %s314, %s328
      %p330 = scmp.eq.s32.totalorder %s28, 0
      %p331 = por %p329, %p330
      %s332 = ssub.s32 %s29, %s41
      %s333 = ssub.s32 %s30, %s37
      %s334 = sor.u32 %s332, %s333
      %p335 = scmp.eq.s32.totalorder %s334, 0
      %s337 = sadd.s32 %s336, 1
      %s338 = scalar_select %p335, %s336, %s337
      %p341 = pneg %p335
      %p342 = scmp.eq.s32.totalorder %s22, 1
      %p343 = por %p341, %p342
      %p344 = scmp.ne.s32.totalorder %s336, %s339
      %p345 = scmp.eq.s32.totalorder %s22, 0
      %p346 = por %p344, %p345
      %p347 = scmp.ne.s32.totalorder %s336, %s339
      %p348 = scmp.eq.s32.totalorder %s27, 1
      %p349 = por %p347, %p348
      %p350 = scmp.ne.s32.totalorder %s339, %s340
      %p351 = scmp.eq.s32.totalorder %s27, 0
      %p352 = por %p350, %p351
      %p353 = scmp.ne.s32.totalorder %s339, %s340
      %p354 = scmp.eq.s32.totalorder %s28, 1
      %p355 = por %p353, %p354
      %p357 = scmp.ne.s32.totalorder %s340, %s356
      %p358 = scmp.eq.s32.totalorder %s28, 0
      %p359 = por %p357, %p358
      %p360 = scmp.le.s32.totalorder 1, %s22
      %p361 = scmp.lt.s32.totalorder %s22, 3
      %p362 = pnand %p360, %p361
      %p363 = pneg %p362
      // Predicated region
      $region9: #{tpu_custom_call.1} parent=5 // pred_check
        _
      $region10: #{tpu_custom_call.1} parent=5 // pred_check_branch
        %365 = sbr.rel (%p362) target = $region12
      $region11: #{tpu_custom_call.1} parent=5 // pred_region
        %s366 = ssub.s32 %s22, 1
        // Predicated region
        $region13: #{tpu_custom_call.1} parent=11 // pred_check
          %p367 = pneg %p135
        $region14: #{tpu_custom_call.1} parent=11 // pred_check_branch
          %369 = sbr.rel (%p367) target = $region16
        $region15: #{tpu_custom_call.1} parent=11 // pred_region
          _
        $region16: #{tpu_custom_call.1} parent=11 // pred_fallthru
          _
        // Predicated region
        $region17: #{tpu_custom_call.1} parent=11 // pred_check
          %p370 = pneg %p156
        $region18: #{tpu_custom_call.1} parent=11 // pred_check_branch
          %372 = sbr.rel (%p370) target = $region20
        $region19: #{tpu_custom_call.1} parent=11 // pred_region
          _
        $region20: #{tpu_custom_call.1} parent=11 // pred_fallthru
          _
        // Predicated region
        $region21: #{tpu_custom_call.1} parent=11 // pred_check
          %p373 = pneg %p177
        $region22: #{tpu_custom_call.1} parent=11 // pred_check_branch
          %375 = sbr.rel (%p373) target = $region24
        $region23: #{tpu_custom_call.1} parent=11 // pred_region
          _
        $region24: #{tpu_custom_call.1} parent=11 // pred_fallthru
          _
        // Predicated region
        $region25: #{tpu_custom_call.1} parent=11 // pred_check
          %p376 = pneg %p198
        $region26: #{tpu_custom_call.1} parent=11 // pred_check_branch
          %378 = sbr.rel (%p376) target = $region28
        $region27: #{tpu_custom_call.1} parent=11 // pred_region
          _
        $region28: #{tpu_custom_call.1} parent=11 // pred_fallthru
          _
        // Predicated region
        $region29: #{tpu_custom_call.1} parent=11 // pred_check
          %p379 = pneg %p219
        $region30: #{tpu_custom_call.1} parent=11 // pred_check_branch
          %381 = sbr.rel (%p379) target = $region32
        $region31: #{tpu_custom_call.1} parent=11 // pred_region
          _
        $region32: #{tpu_custom_call.1} parent=11 // pred_fallthru
          _
        // Predicated region
        $region33: #{tpu_custom_call.1} parent=11 // pred_check
          %p382 = pneg %p240
        $region34: #{tpu_custom_call.1} parent=11 // pred_check_branch
          %384 = sbr.rel (%p382) target = $region36
        $region35: #{tpu_custom_call.1} parent=11 // pred_region
          _
        $region36: #{tpu_custom_call.1} parent=11 // pred_fallthru
          _
        // Predicated region
        $region37: #{tpu_custom_call.1} parent=11 // pred_check
          %p385 = pneg %p261
        $region38: #{tpu_custom_call.1} parent=11 // pred_check_branch
          %387 = sbr.rel (%p385) target = $region40
        $region39: #{tpu_custom_call.1} parent=11 // pred_region
          _
        $region40: #{tpu_custom_call.1} parent=11 // pred_fallthru
          _
        // Predicated region
        $region41: #{tpu_custom_call.1} parent=11 // pred_check
          %p388 = pneg %p282
        $region42: #{tpu_custom_call.1} parent=11 // pred_check_branch
          %390 = sbr.rel (%p388) target = $region44
        $region43: #{tpu_custom_call.1} parent=11 // pred_region
          _
        $region44: #{tpu_custom_call.1} parent=11 // pred_fallthru
          _
        // Predicated region
        $region45: #{tpu_custom_call.1} parent=11 // pred_check
          %p391 = pneg %p303
        $region46: #{tpu_custom_call.1} parent=11 // pred_check_branch
          %393 = sbr.rel (%p391) target = $region48
        $region47: #{tpu_custom_call.1} parent=11 // pred_region
          _
        $region48: #{tpu_custom_call.1} parent=11 // pred_fallthru
          _
        // Predicated region
        $region49: #{tpu_custom_call.1} parent=11 // pred_check
          %p394 = pneg %p324
        $region50: #{tpu_custom_call.1} parent=11 // pred_check_branch
          %396 = sbr.rel (%p394) target = $region52
        $region51: #{tpu_custom_call.1} parent=11 // pred_region
          _
        $region52: #{tpu_custom_call.1} parent=11 // pred_fallthru
          _
      $region12: #{tpu_custom_call.1} parent=5 // pred_fallthru
        _
      %p397 = scmp.lt.s32.totalorder %s22, 2
      // Predicated region
      $region53: #{tpu_custom_call.1} parent=5 // pred_check
        %p398 = pneg %p397
      $region54: #{tpu_custom_call.1} parent=5 // pred_check_branch
        %400 = sbr.rel (%p398) target = $region56
      $region55: #{tpu_custom_call.1} parent=5 // pred_region
        // Predicated region
        $region57: #{tpu_custom_call.1} parent=55 // pred_check
          %p401 = pneg %p56
        $region58: #{tpu_custom_call.1} parent=55 // pred_check_branch
          %403 = sbr.rel (%p401) target = $region60
        $region59: #{tpu_custom_call.1} parent=55 // pred_region
          %p404 = scmp.lt.s32.totalorder %s29, 1
          %s405 = scalar_select %p404, %s29, 1
          %p406 = scmp.lt.s32.totalorder %s30, 0
          %s407 = scalar_select %p406, %s30, 0
          %s408 = sadd.s32 %s407, %s405
          %s409 = smul.addr %s408, 8
          %s410 = scalar_lea.vmem %s0, %s409
        $region60: #{tpu_custom_call.1} parent=55 // pred_fallthru
          _
        // Predicated region
        $region61: #{tpu_custom_call.1} parent=55 // pred_check
          %p411 = pneg %p82
        $region62: #{tpu_custom_call.1} parent=55 // pred_check_branch
          %413 = sbr.rel (%p411) target = $region64
        $region63: #{tpu_custom_call.1} parent=55 // pred_region
          %p414 = scmp.lt.s32.totalorder %s29, 1
          %s415 = scalar_select %p414, %s29, 1
          %s416 = smul.addr %s415, 4
          %s417 = smul.addr %s416, 4
          %s418 = scalar_lea.vmem %s1, %s417
        $region64: #{tpu_custom_call.1} parent=55 // pred_fallthru
          _
        // Predicated region
        $region65: #{tpu_custom_call.1} parent=55 // pred_check
          %p419 = pneg %p108
        $region66: #{tpu_custom_call.1} parent=55 // pred_check_branch
          %421 = sbr.rel (%p419) target = $region68
        $region67: #{tpu_custom_call.1} parent=55 // pred_region
          %p422 = scmp.lt.s32.totalorder %s29, 1
          %s423 = scalar_select %p422, %s29, 1
          %s424 = smul.addr %s423, 4
          %s425 = smul.addr %s424, 4
          %s426 = scalar_lea.vmem %s2, %s425
        $region68: #{tpu_custom_call.1} parent=55 // pred_fallthru
          _
      $region56: #{tpu_custom_call.1} parent=5 // pred_fallthru
        _
      %p427 = scmp.le.s32.totalorder 1, %s22
      %p428 = scmp.lt.s32.totalorder %s22, 3
      %p429 = pnand %p427, %p428
      %p430 = pneg %p429
      // Predicated region
      $region69: #{tpu_custom_call.1} parent=5 // pred_check
        _
      $region70: #{tpu_custom_call.1} parent=5 // pred_check_branch
        %432 = sbr.rel (%p429) target = $region72
      $region71: #{tpu_custom_call.1} parent=5 // pred_region
        %s433 = ssub.s32 %s22, 1
        %p434 = scmp.lt.s32.totalorder %s31, 1
        %s435 = scalar_select %p434, %s31, 1
        %p436 = scmp.lt.s32.totalorder %s32, 0
        %s437 = scalar_select %p436, %s32, 0
        %s438 = sadd.s32 %s437, %s435
        %s439 = smul.addr %s438, 8
        %s440 = scalar_lea.vmem %s0, %s439
        %p441 = pneg %p62
        %p442 = pneg %p59
        %p443 = scmp.lt.s32.totalorder %s31, 1
        %s444 = scalar_select %p443, %s31, 1
        %s445 = smul.addr %s444, 4
        %s446 = smul.addr %s445, 4
        %s447 = scalar_lea.vmem %s1, %s446
        %p448 = pneg %p88
        %p449 = pneg %p85
        %p450 = scmp.lt.s32.totalorder %s31, 1
        %s451 = scalar_select %p450, %s31, 1
        %s452 = smul.addr %s451, 4
        %s453 = smul.addr %s452, 4
        %s454 = scalar_lea.vmem %s2, %s453
        %p455 = pneg %p114
        %p456 = pneg %p111
        %p457 = pneg %p135
        %p458 = pneg %p132
        %p459 = pneg %p156
        %p460 = pneg %p153
        %p461 = pneg %p177
        %p462 = pneg %p174
        %p463 = pneg %p198
        %p464 = pneg %p195
        %p465 = pneg %p219
        %p466 = pneg %p216
        %p467 = pneg %p240
        %p468 = pneg %p237
        %p469 = pneg %p261
        %p470 = pneg %p258
        %p471 = pneg %p282
        %p472 = pneg %p279
        %p473 = pneg %p303
        %p474 = pneg %p300
        %p475 = pneg %p324
        %p476 = pneg %p321
        %p477 = pneg %p352
        %p478 = pneg %p349
        %s479 = sand.u32 %s339, 1
        %s480 = scalar_lea.sflag [#allocation4], %s479
        %s481 = sand.u32 %s339, 1
        %s482 = smul.addr %s481, 8
        %s483 = scalar_lea.vmem [#allocation3], %s482
        %p484 = scmp.lt.s32.totalorder %s31, 1
        %s485 = scalar_select %p484, %s31, 1
        %p486 = scmp.lt.s32.totalorder %s32, 0
        %s487 = scalar_select %p486, %s32, 0
        %s488 = sadd.s32 %s487, %s485
        %s489 = smul.addr %s488, 8
        %s490 = scalar_lea.vmem %s0, %s489
        %p491 = scmp.lt.s32.totalorder %s31, 1
        %s492 = scalar_select %p491, %s31, 1
        %s493 = smul.addr %s492, 4
        %s494 = smul.addr %s493, 4
        %s495 = scalar_lea.vmem %s1, %s494
        %p496 = scmp.lt.s32.totalorder %s31, 1
        %s497 = scalar_select %p496, %s31, 1
        %s498 = smul.addr %s497, 4
        %s499 = smul.addr %s498, 4
        %s500 = scalar_lea.vmem %s2, %s499
        %v502 = vld [vmem:[%s490] sm:$0xff]
        %v503 = vpack.c.bf16 %v502, %v502
        %v504 = vlaneseq
        %v505 = vand.u32 %v504, 127
        %vm506 = vcmp.lt.s32.totalorder %v505, 32
        %v507 = vsel %vm506, 1, 0
        %v508 = vcvt.s32.f32 %v507
        %509 = vst [vmem:[#allocation2] sm:$0xff] 0.0
        loop: start=0, step=1, limit=4
        $region73: #{tpu_custom_call.1} parent=71 // loop_pre_header
          _
        $region74: #{tpu_custom_call.1} parent=71 // loop_header
          %s511 = sphi 0, %s515
          %p512 = scmp.ge.s32.totalorder %s511, 4
        $region75: #{tpu_custom_call.1} parent=71 // loop_header_branch
          %514 = sbr.rel (%p512) target = $region79
        $region76: #{tpu_custom_call.1} parent=71 // loop_body
          %s516 = smul.u32 %s511, 16
          %s517 = smul.addr %s516, 4
          %s518 = scalar_lea.vmem %s3, %s517
          %v519 = vld [vmem:[%s518] sm:$0xf]
          %v520 = vld [vmem:[%s518 + $0x4] sm:$0xf]
          %v521 = vld [vmem:[%s518 + $0x8] sm:$0xf]
          %v522 = vld [vmem:[%s518 + $0xc] sm:$0xf]
          %v523 = vld [vmem:[%s518 + $0x10] sm:$0xf]
          %v524 = vld [vmem:[%s518 + $0x14] sm:$0xf]
          %v525 = vld [vmem:[%s518 + $0x18] sm:$0xf]
          %v526 = vld [vmem:[%s518 + $0x1c] sm:$0xf]
          %v527 = vld [vmem:[%s518 + $0x20] sm:$0xf]
          %v528 = vld [vmem:[%s518 + $0x24] sm:$0xf]
          %v529 = vld [vmem:[%s518 + $0x28] sm:$0xf]
          %v530 = vld [vmem:[%s518 + $0x2c] sm:$0xf]
          %v531 = vld [vmem:[%s518 + $0x30] sm:$0xf]
          %v532 = vld [vmem:[%s518 + $0x34] sm:$0xf]
          %v533 = vld [vmem:[%s518 + $0x38] sm:$0xf]
          %v534 = vld [vmem:[%s518 + $0x3c] sm:$0xf]
          %v551 = vunpack.c.l.b16 %v519
          %v552 = vunpack.c.l.b16 %v520
          %v553 = vunpack.c.l.b16 %v521
          %v554 = vunpack.c.l.b16 %v522
          %v555 = vunpack.c.l.b16 %v523
          %v556 = vunpack.c.l.b16 %v524
          %v557 = vunpack.c.l.b16 %v525
          %v558 = vunpack.c.l.b16 %v526
          %v559 = vunpack.c.l.b16 %v527
          %v560 = vunpack.c.l.b16 %v528
          %v561 = vunpack.c.l.b16 %v529
          %v562 = vunpack.c.l.b16 %v530
          %v563 = vunpack.c.l.b16 %v531
          %v564 = vunpack.c.l.b16 %v532
          %v565 = vunpack.c.l.b16 %v533
          %v566 = vunpack.c.l.b16 %v534
          %v567 = vpack.c.b16 %v552, %v551
          %v568 = vpack.c.b16 %v554, %v553
          %v569 = vpack.c.b16 %v556, %v555
          %v570 = vpack.c.b16 %v558, %v557
          %v571 = vpack.c.b16 %v560, %v559
          %v572 = vpack.c.b16 %v562, %v561
          %v573 = vpack.c.b16 %v564, %v563
          %v574 = vpack.c.b16 %v566, %v565
          %583 = vmatprep.subr.bf16.mxu0 0
          %584 = vmatpush1.bf16.msra.mxu0 %v567
          %585 = vmatprep.subr.bf16.mxu0 0
          %586 = vmatpush1.bf16.msra.mxu0 %v568
          %587 = vmatprep.subr.bf16.mxu0 0
          %588 = vmatpush1.bf16.msra.mxu0 %v569
          %589 = vmatprep.subr.bf16.mxu0 0
          %590 = vmatpush1.bf16.msra.mxu0 %v570
          %591 = vmatprep.subr.bf16.mxu0 0
          %592 = vmatpush1.bf16.msra.mxu0 %v571
          %593 = vmatprep.subr.bf16.mxu0 0
          %594 = vmatpush1.bf16.msra.mxu0 %v572
          %595 = vmatprep.subr.bf16.mxu0 0
          %596 = vmatpush1.bf16.msra.mxu0 %v573
          %597 = vmatprep.subr.bf16.mxu0 0
          %598 = vmatpush1.bf16.msra.mxu0 %v574
          %599 = vmatprep.subr.bf16.mxu0 0
          %600 = vmatpush1.bf16.msra.mxu0 0
          %601 = vmatprep.subr.bf16.mxu0 0
          %602 = vmatpush1.bf16.msra.mxu0 0
          %603 = vmatprep.subr.bf16.mxu0 0
          %604 = vmatpush1.bf16.msra.mxu0 0
          %605 = vmatprep.subr.bf16.mxu0 0
          %606 = vmatpush1.bf16.msra.mxu0 0
          %607 = vmatprep.subr.bf16.mxu0 0
          %608 = vmatpush1.bf16.msra.mxu0 0
          %609 = vmatprep.subr.bf16.mxu0 0
          %610 = vmatpush1.bf16.msra.mxu0 0
          %611 = vmatprep.subr.bf16.mxu0 0
          %612 = vmatpush1.bf16.msra.mxu0 0
          %613 = vmatprep.subr.bf16.mxu0 0
          %614 = vmatpush1.bf16.msra.mxu0 0
          %615 = vmatprep.mubr.bf16.mxu0 0
          %616 = vmatmul.mubr.bf16.gmra.mrb[0].mxu0 %v503
          %v617 = vpop.f32.mrb[0].mxu0
          %v618 = vadd.f32 0.0, %v617
          %v619 = vpop.f32.mrb[0].mxu0
          %v620 = vpop.f32.mrb[0].mxu0
          %v621 = vpop.f32.mrb[0].mxu0
          %622 = vdwg.mxu0
          %v623 = vpack.c.bf16 %v618, %v618
          %s624 = smul.addr %s511, 4
          %s625 = scalar_lea.vmem %s495, %s624
          %v626 = vld [vmem:[%s625] sm:$0xf]
          %s627 = smul.addr %s511, 4
          %s628 = scalar_lea.vmem %s500, %s627
          %v629 = vld [vmem:[%s628] sm:$0xf]
          %vm630 = vcmask 64512
          %v632 = vsel %vm630, %v623, 0
          %v635 = vsel %vm630, %v626, 0
          %637 = vmatprep.subr.bf16.mxu0 0
          %638 = vmatpush1.bf16.xpose.msra.mxu0 %v635
          %639 = vmatprep.subr.bf16.mxu0 0
          %640 = vmatpush1.bf16.xpose.msra.mxu0 0
          %641 = vmatprep.subr.bf16.mxu0 0
          %642 = vmatpush1.bf16.xpose.msra.mxu0 0
          %643 = vmatprep.subr.bf16.mxu0 0
          %644 = vmatpush1.bf16.xpose.msra.mxu0 0
          %645 = vmatprep.subr.bf16.mxu0 0
          %646 = vmatpush1.bf16.xpose.msra.mxu0 0
          %647 = vmatprep.subr.bf16.mxu0 0
          %648 = vmatpush1.bf16.xpose.msra.mxu0 0
          %649 = vmatprep.subr.bf16.mxu0 0
          %650 = vmatpush1.bf16.xpose.msra.mxu0 0
          %651 = vmatprep.subr.bf16.mxu0 0
          %652 = vmatpush1.bf16.xpose.msra.mxu0 0
          %653 = vmatprep.subr.bf16.mxu0 0
          %654 = vmatpush1.bf16.xpose.msra.mxu0 0
          %655 = vmatprep.subr.bf16.mxu0 0
          %656 = vmatpush1.bf16.xpose.msra.mxu0 0
          %657 = vmatprep.subr.bf16.mxu0 0
          %658 = vmatpush1.bf16.xpose.msra.mxu0 0
          %659 = vmatprep.subr.bf16.mxu0 0
          %660 = vmatpush1.bf16.xpose.msra.mxu0 0
          %661 = vmatprep.subr.bf16.mxu0 0
          %662 = vmatpush1.bf16.xpose.msra.mxu0 0
          %663 = vmatprep.subr.bf16.mxu0 0
          %664 = vmatpush1.bf16.xpose.msra.mxu0 0
          %665 = vmatprep.subr.bf16.mxu0 0
          %666 = vmatpush1.bf16.xpose.msra.mxu0 0
          %667 = vmatprep.subr.bf16.mxu0 0
          %668 = vmatpush1.bf16.xpose.msra.mxu0 0
          %669 = vmatprep.mubr.bf16.mxu0 0
          %670 = vmatmul.mubr.bf16.gmra.mrb[0].mxu0 %v632
          %v671 = vpop.f32.mrb[0].mxu0
          %v672 = vadd.f32 0.0, %v671
          %v673 = vpop.f32.mrb[0].mxu0
          %v674 = vpop.f32.mrb[0].mxu0
          %v675 = vpop.f32.mrb[0].mxu0
          %676 = vdwg.mxu0
          %v677 = vsel %vm630, %v672, -inf
          %678 = vmax.xlane.f32.xlu0 %v677
          %v679 = vpop.xlane.xlu0 %678
          %v680 = vsub.f32 %v672, %v679
          %v681 = vmul.f32 %v680, 1.442695
          %v682 = vpow.pop %v681
          %v683 = vsel %vm630, %v682, 0.0
          %684 = vadd.xlane.f32.xlu0 %v683
          %v685 = vpop.xlane.xlu0 %684
          %v686 = vrcp.pop %v685
          %v687 = vmul.f32 %v682, %v686
          %v688 = vpack.c.bf16 %v687, %v687
          %v690 = vsel %vm630, %v688, 0
          %vm692 = vcmask 1043456
          %v694 = vsel %vm692, %v629, 0
          %696 = vmatprep.subr.bf16.mxu0 0
          %697 = vmatpush1.bf16.msra.mxu0 %v694
          %698 = vmatprep.subr.bf16.mxu0 0
          %699 = vmatpush1.bf16.msra.mxu0 0
          %700 = vmatprep.subr.bf16.mxu0 0
          %701 = vmatpush1.bf16.msra.mxu0 0
          %702 = vmatprep.subr.bf16.mxu0 0
          %703 = vmatpush1.bf16.msra.mxu0 0
          %704 = vmatprep.subr.bf16.mxu0 0
          %705 = vmatpush1.bf16.msra.mxu0 0
          %706 = vmatprep.subr.bf16.mxu0 0
          %707 = vmatpush1.bf16.msra.mxu0 0
          %708 = vmatprep.subr.bf16.mxu0 0
          %709 = vmatpush1.bf16.msra.mxu0 0
          %710 = vmatprep.subr.bf16.mxu0 0
          %711 = vmatpush1.bf16.msra.mxu0 0
          %712 = vmatprep.subr.bf16.mxu0 0
          %713 = vmatpush1.bf16.msra.mxu0 0
          %714 = vmatprep.subr.bf16.mxu0 0
          %715 = vmatpush1.bf16.msra.mxu0 0
          %716 = vmatprep.subr.bf16.mxu0 0
          %717 = vmatpush1.bf16.msra.mxu0 0
          %718 = vmatprep.subr.bf16.mxu0 0
          %719 = vmatpush1.bf16.msra.mxu0 0
          %720 = vmatprep.subr.bf16.mxu0 0
          %721 = vmatpush1.bf16.msra.mxu0 0
          %722 = vmatprep.subr.bf16.mxu0 0
          %723 = vmatpush1.bf16.msra.mxu0 0
          %724 = vmatprep.subr.bf16.mxu0 0
          %725 = vmatpush1.bf16.msra.mxu0 0
          %726 = vmatprep.subr.bf16.mxu0 0
          %727 = vmatpush1.bf16.msra.mxu0 0
          %728 = vmatprep.mubr.bf16.mxu0 0
          %729 = vmatmul.mubr.bf16.gmra.mrb[0].mxu0 %v690
          %v730 = vpop.f32.mrb[0].mxu0
          %v731 = vadd.f32 0.0, %v730
          %v732 = vpop.f32.mrb[0].mxu0
          %v733 = vpop.f32.mrb[0].mxu0
          %v734 = vpop.f32.mrb[0].mxu0
          %735 = vdwg.mxu0
          %v736 = vld [vmem:[#allocation2] sm:$0xff]
          %v737 = vpack.c.bf16 %v731, %v731
          %s738 = smul.addr %s511, 4
          %s739 = scalar_lea.vmem %s4, %s738
          %v740 = vld [vmem:[%s739] sm:$0xf]
          %v742 = vsel %vm630, %v737, 0
          %v745 = vsel %vm692, %v740, 0
          %747 = vmatprep.subr.bf16.mxu0 0
          %748 = vmatpush1.bf16.msra.mxu0 %v745
          %749 = vmatprep.subr.bf16.mxu0 0
          %750 = vmatpush1.bf16.msra.mxu0 0
          %751 = vmatprep.subr.bf16.mxu0 0
          %752 = vmatpush1.bf16.msra.mxu0 0
          %753 = vmatprep.subr.bf16.mxu0 0
          %754 = vmatpush1.bf16.msra.mxu0 0
          %755 = vmatprep.subr.bf16.mxu0 0
          %756 = vmatpush1.bf16.msra.mxu0 0
          %757 = vmatprep.subr.bf16.mxu0 0
          %758 = vmatpush1.bf16.msra.mxu0 0
          %759 = vmatprep.subr.bf16.mxu0 0
          %760 = vmatpush1.bf16.msra.mxu0 0
          %761 = vmatprep.subr.bf16.mxu0 0
          %762 = vmatpush1.bf16.msra.mxu0 0
          %763 = vmatprep.subr.bf16.mxu0 0
          %764 = vmatpush1.bf16.msra.mxu0 0
          %765 = vmatprep.subr.bf16.mxu0 0
          %766 = vmatpush1.bf16.msra.mxu0 0
          %767 = vmatprep.subr.bf16.mxu0 0
          %768 = vmatpush1.bf16.msra.mxu0 0
          %769 = vmatprep.subr.bf16.mxu0 0
          %770 = vmatpush1.bf16.msra.mxu0 0
          %771 = vmatprep.subr.bf16.mxu0 0
          %772 = vmatpush1.bf16.msra.mxu0 0
          %773 = vmatprep.subr.bf16.mxu0 0
          %774 = vmatpush1.bf16.msra.mxu0 0
          %775 = vmatprep.subr.bf16.mxu0 0
          %776 = vmatpush1.bf16.msra.mxu0 0
          %777 = vmatprep.subr.bf16.mxu0 0
          %778 = vmatpush1.bf16.msra.mxu0 0
          %779 = vmatprep.mubr.bf16.mxu0 0
          %780 = vmatmul.mubr.bf16.gmra.mrb[0].mxu0 %v742
          %v781 = vpop.f32.mrb[0].mxu0
          %v782 = vadd.f32 0.0, %v781
          %v783 = vpop.f32.mrb[0].mxu0
          %v784 = vpop.f32.mrb[0].mxu0
          %v785 = vpop.f32.mrb[0].mxu0
          %786 = vdwg.mxu0
          %v787 = vadd.f32 %v736, %v782
          %788 = vst [vmem:[#allocation2] sm:$0xff] %v787
        $region77: #{tpu_custom_call.1} parent=71 // loop_footer
          %s515 = sadd.s32 1, %s511
        $region78: #{tpu_custom_call.1} parent=71 // loop_footer_branch
          %510 = sbr.rel target = $region74
        $region79: #{tpu_custom_call.1} parent=71 // loop_exit
          _
        %v789 = vld [vmem:[#allocation2] sm:$0xff]
        %v790 = vadd.f32 %v502, %v789
        %v791 = vld [vmem:[%s5] sm:$0x1]
        %v792 = vld [vmem:[%s6] sm:$0x1]
        %793 = vadd.xlane.f32.xlu0 %v790
        %v794 = vpop.xlane.xlu0 %793
        %v795 = vmul.f32 %v794, 0.03125
        %v796 = vsub.f32 %v790, %v795
        %v797 = vmul.f32 %v796, %v508
        %v798 = vmul.f32 %v797, %v797
        %799 = vadd.xlane.f32.xlu0 %v798
        %v800 = vpop.xlane.xlu0 %799
        %v801 = vmul.f32 %v800, 0.03125
        %v802 = vadd.f32 %v801, 1e-05
        %v803 = vrsqrt.pop %v802
        %v804 = vmul.f32 %v797, %v803
        %v806 = vlaneseq
        %v807 = vshrl.u32 %v806, 7
        %v808 = vsub.s32 0, %v807
        %v809 = vrot.slane %v791, %v808
        %v811 = vmul.f32 %v804, %v809
        %v813 = vlaneseq
        %v814 = vshrl.u32 %v813, 7
        %v815 = vsub.s32 0, %v814
        %v816 = vrot.slane %v792, %v815
        %v818 = vadd.f32 %v811, %v816
        %v819 = vpack.c.bf16 %v818, %v818
        %v820 = vld [vmem:[%s7] sm:$0xf]
        %v821 = vld [vmem:[%s7 + $0x4] sm:$0xf]
        %v822 = vld [vmem:[%s7 + $0x8] sm:$0xf]
        %v823 = vld [vmem:[%s7 + $0xc] sm:$0xf]
        %v824 = vld [vmem:[%s7 + $0x10] sm:$0xf]
        %v825 = vld [vmem:[%s7 + $0x14] sm:$0xf]
        %v826 = vld [vmem:[%s7 + $0x18] sm:$0xf]
        %v827 = vld [vmem:[%s7 + $0x1c] sm:$0xf]
        %v828 = vld [vmem:[%s7 + $0x20] sm:$0xf]
        %v829 = vld [vmem:[%s7 + $0x24] sm:$0xf]
        %v830 = vld [vmem:[%s7 + $0x28] sm:$0xf]
        %v831 = vld [vmem:[%s7 + $0x2c] sm:$0xf]
        %v832 = vld [vmem:[%s7 + $0x30] sm:$0xf]
        %v833 = vld [vmem:[%s7 + $0x34] sm:$0xf]
        %v834 = vld [vmem:[%s7 + $0x38] sm:$0xf]
        %v835 = vld [vmem:[%s7 + $0x3c] sm:$0xf]
        %v836 = vld [vmem:[%s8] sm:$0x1]
        %v838 = vlaneseq
        %v839 = vshrl.u32 %v838, 7
        %v840 = vsub.s32 0, %v839
        %v841 = vrot.slane %v836, %v840
        %v859 = vunpack.c.l.b16 %v820
        %v860 = vunpack.c.l.b16 %v821
        %v861 = vunpack.c.l.b16 %v822
        %v862 = vunpack.c.l.b16 %v823
        %v863 = vunpack.c.l.b16 %v824
        %v864 = vunpack.c.l.b16 %v825
        %v865 = vunpack.c.l.b16 %v826
        %v866 = vunpack.c.l.b16 %v827
        %v867 = vunpack.c.l.b16 %v828
        %v868 = vunpack.c.l.b16 %v829
        %v869 = vunpack.c.l.b16 %v830
        %v870 = vunpack.c.l.b16 %v831
        %v871 = vunpack.c.l.b16 %v832
        %v872 = vunpack.c.l.b16 %v833
        %v873 = vunpack.c.l.b16 %v834
        %v874 = vunpack.c.l.b16 %v835
        %v875 = vpack.c.b16 %v860, %v859
        %v876 = vpack.c.b16 %v862, %v861
        %v877 = vpack.c.b16 %v864, %v863
        %v878 = vpack.c.b16 %v866, %v865
        %v879 = vpack.c.b16 %v868, %v867
        %v880 = vpack.c.b16 %v870, %v869
        %v881 = vpack.c.b16 %v872, %v871
        %v882 = vpack.c.b16 %v874, %v873
        %891 = vmatprep.subr.bf16.mxu0 0
        %892 = vmatpush1.bf16.msra.mxu0 %v875
        %893 = vmatprep.subr.bf16.mxu0 0
        %894 = vmatpush1.bf16.msra.mxu0 %v876
        %895 = vmatprep.subr.bf16.mxu0 0
        %896 = vmatpush1.bf16.msra.mxu0 %v877
        %897 = vmatprep.subr.bf16.mxu0 0
        %898 = vmatpush1.bf16.msra.mxu0 %v878
        %899 = vmatprep.subr.bf16.mxu0 0
        %900 = vmatpush1.bf16.msra.mxu0 %v879
        %901 = vmatprep.subr.bf16.mxu0 0
        %902 = vmatpush1.bf16.msra.mxu0 %v880
        %903 = vmatprep.subr.bf16.mxu0 0
        %904 = vmatpush1.bf16.msra.mxu0 %v881
        %905 = vmatprep.subr.bf16.mxu0 0
        %906 = vmatpush1.bf16.msra.mxu0 %v882
        %907 = vmatprep.subr.bf16.mxu0 0
        %908 = vmatpush1.bf16.msra.mxu0 0
        %909 = vmatprep.subr.bf16.mxu0 0
        %910 = vmatpush1.bf16.msra.mxu0 0
        %911 = vmatprep.subr.bf16.mxu0 0
        %912 = vmatpush1.bf16.msra.mxu0 0
        %913 = vmatprep.subr.bf16.mxu0 0
        %914 = vmatpush1.bf16.msra.mxu0 0
        %915 = vmatprep.subr.bf16.mxu0 0
        %916 = vmatpush1.bf16.msra.mxu0 0
        %917 = vmatprep.subr.bf16.mxu0 0
        %918 = vmatpush1.bf16.msra.mxu0 0
        %919 = vmatprep.subr.bf16.mxu0 0
        %920 = vmatpush1.bf16.msra.mxu0 0
        %921 = vmatprep.subr.bf16.mxu0 0
        %922 = vmatpush1.bf16.msra.mxu0 0
        %923 = vmatprep.mubr.bf16.mxu0 0
        %924 = vmatmul.mubr.bf16.gmra.mrb[0].mxu0 %v819
        %v925 = vpop.f32.mrb[0].mxu0
        %v926 = vadd.f32 %v841, %v925
        %v927 = vpop.f32.mrb[0].mxu0
        %v928 = vpop.f32.mrb[0].mxu0
        %v929 = vpop.f32.mrb[0].mxu0
        %930 = vdwg.mxu0
        %v931 = vmul.f32 %v926, 0.5
        %v932 = vmul.f32 %v926, 0.044715
        %v933 = vmul.f32 %v932, %v926
        %v934 = vmul.f32 %v933, %v926
        %v935 = vadd.f32 %v926, %v934
        %v936 = vmul.f32 %v935, 0.7978846
        %v937 = vtanh.pop %v936
        %v938 = vadd.f32 %v937, 1.0
        %v939 = vmul.f32 %v931, %v938
        %v940 = vpack.c.bf16 %v939, %v939
        %v941 = vld [vmem:[%s9] sm:$0xf]
        %v942 = vld [vmem:[%s9 + $0x4] sm:$0xf]
        %v943 = vld [vmem:[%s9 + $0x8] sm:$0xf]
        %v944 = vld [vmem:[%s9 + $0xc] sm:$0xf]
        %v945 = vld [vmem:[%s9 + $0x10] sm:$0xf]
        %v946 = vld [vmem:[%s9 + $0x14] sm:$0xf]
        %v947 = vld [vmem:[%s9 + $0x18] sm:$0xf]
        %v948 = vld [vmem:[%s9 + $0x1c] sm:$0xf]
        %v949 = vld [vmem:[%s9 + $0x20] sm:$0xf]
        %v950 = vld [vmem:[%s9 + $0x24] sm:$0xf]
        %v951 = vld [vmem:[%s9 + $0x28] sm:$0xf]
        %v952 = vld [vmem:[%s9 + $0x2c] sm:$0xf]
        %v953 = vld [vmem:[%s9 + $0x30] sm:$0xf]
        %v954 = vld [vmem:[%s9 + $0x34] sm:$0xf]
        %v955 = vld [vmem:[%s9 + $0x38] sm:$0xf]
        %v956 = vld [vmem:[%s9 + $0x3c] sm:$0xf]
        %v957 = vld [vmem:[%s10] sm:$0x1]
        %v959 = vlaneseq
        %v960 = vshrl.u32 %v959, 7
        %v961 = vsub.s32 0, %v960
        %v962 = vrot.slane %v957, %v961
        %v980 = vunpack.c.l.b16 %v941
        %v981 = vunpack.c.l.b16 %v942
        %v982 = vunpack.c.l.b16 %v943
        %v983 = vunpack.c.l.b16 %v944
        %v984 = vunpack.c.l.b16 %v945
        %v985 = vunpack.c.l.b16 %v946
        %v986 = vunpack.c.l.b16 %v947
        %v987 = vunpack.c.l.b16 %v948
        %v988 = vunpack.c.l.b16 %v949
        %v989 = vunpack.c.l.b16 %v950
        %v990 = vunpack.c.l.b16 %v951
        %v991 = vunpack.c.l.b16 %v952
        %v992 = vunpack.c.l.b16 %v953
        %v993 = vunpack.c.l.b16 %v954
        %v994 = vunpack.c.l.b16 %v955
        %v995 = vunpack.c.l.b16 %v956
        %v996 = vpack.c.b16 %v981, %v980
        %v997 = vpack.c.b16 %v983, %v982
        %v998 = vpack.c.b16 %v985, %v984
        %v999 = vpack.c.b16 %v987, %v986
        %v1000 = vpack.c.b16 %v989, %v988
        %v1001 = vpack.c.b16 %v991, %v990
        %v1002 = vpack.c.b16 %v993, %v992
        %v1003 = vpack.c.b16 %v995, %v994
        %1012 = vmatprep.subr.bf16.mxu0 0
        %1013 = vmatpush1.bf16.msra.mxu0 %v996
        %1014 = vmatprep.subr.bf16.mxu0 0
        %1015 = vmatpush1.bf16.msra.mxu0 %v997
        %1016 = vmatprep.subr.bf16.mxu0 0
        %1017 = vmatpush1.bf16.msra.mxu0 %v998
        %1018 = vmatprep.subr.bf16.mxu0 0
        %1019 = vmatpush1.bf16.msra.mxu0 %v999
        %1020 = vmatprep.subr.bf16.mxu0 0
        %1021 = vmatpush1.bf16.msra.mxu0 %v1000
        %1022 = vmatprep.subr.bf16.mxu0 0
        %1023 = vmatpush1.bf16.msra.mxu0 %v1001
        %1024 = vmatprep.subr.bf16.mxu0 0
        %1025 = vmatpush1.bf16.msra.mxu0 %v1002
        %1026 = vmatprep.subr.bf16.mxu0 0
        %1027 = vmatpush1.bf16.msra.mxu0 %v1003
        %1028 = vmatprep.subr.bf16.mxu0 0
        %1029 = vmatpush1.bf16.msra.mxu0 0
        %1030 = vmatprep.subr.bf16.mxu0 0
        %1031 = vmatpush1.bf16.msra.mxu0 0
        %1032 = vmatprep.subr.bf16.mxu0 0
        %1033 = vmatpush1.bf16.msra.mxu0 0
        %1034 = vmatprep.subr.bf16.mxu0 0
        %1035 = vmatpush1.bf16.msra.mxu0 0
        %1036 = vmatprep.subr.bf16.mxu0 0
        %1037 = vmatpush1.bf16.msra.mxu0 0
        %1038 = vmatprep.subr.bf16.mxu0 0
        %1039 = vmatpush1.bf16.msra.mxu0 0
        %1040 = vmatprep.subr.bf16.mxu0 0
        %1041 = vmatpush1.bf16.msra.mxu0 0
        %1042 = vmatprep.subr.bf16.mxu0 0
        %1043 = vmatpush1.bf16.msra.mxu0 0
        %1044 = vmatprep.mubr.bf16.mxu0 0
        %1045 = vmatmul.mubr.bf16.gmra.mrb[0].mxu0 %v940
        %v1046 = vpop.f32.mrb[0].mxu0
        %v1047 = vadd.f32 %v962, %v1046
        %v1048 = vpop.f32.mrb[0].mxu0
        %v1049 = vpop.f32.mrb[0].mxu0
        %v1050 = vpop.f32.mrb[0].mxu0
        %1051 = vdwg.mxu0
        %v1052 = vadd.f32 %v818, %v1047
        %v1053 = vld [vmem:[%s11] sm:$0x1]
        %v1054 = vld [vmem:[%s12] sm:$0x1]
        %1055 = vadd.xlane.f32.xlu0 %v1052
        %v1056 = vpop.xlane.xlu0 %1055
        %v1057 = vmul.f32 %v1056, 0.03125
        %v1058 = vsub.f32 %v1052, %v1057
        %v1059 = vmul.f32 %v1058, %v508
        %v1060 = vmul.f32 %v1059, %v1059
        %1061 = vadd.xlane.f32.xlu0 %v1060
        %v1062 = vpop.xlane.xlu0 %1061
        %v1063 = vmul.f32 %v1062, 0.03125
        %v1064 = vadd.f32 %v1063, 1e-05
        %v1065 = vrsqrt.pop %v1064
        %v1066 = vmul.f32 %v1059, %v1065
        %v1068 = vlaneseq
        %v1069 = vshrl.u32 %v1068, 7
        %v1070 = vsub.s32 0, %v1069
        %v1071 = vrot.slane %v1053, %v1070
        %v1073 = vmul.f32 %v1066, %v1071
        %v1075 = vlaneseq
        %v1076 = vshrl.u32 %v1075, 7
        %v1077 = vsub.s32 0, %v1076
        %v1078 = vrot.slane %v1054, %v1077
        %v1080 = vadd.f32 %v1073, %v1078
        %1081 = vst [vmem:[%s483] sm:$0xff] %v1080
        %s1082 = sand.u32 %s339, 1
        %s1083 = scalar_lea.sflag [#allocation4], %s1082
        %s1084 = sand.u32 %s339, 1
        %s1085 = smul.addr %s1084, 8
        %s1086 = scalar_lea.vmem [#allocation3], %s1085
        // Predicated region
        $region80: #{tpu_custom_call.1} parent=71 // pred_check
          %p1087 = pneg %p349
        $region81: #{tpu_custom_call.1} parent=71 // pred_check_branch
          %1089 = sbr.rel (%p1087) target = $region83
        $region82: #{tpu_custom_call.1} parent=71 // pred_region
          %s1091 = ssub.s32 128, 128
          %1092 = vsyncadd %s1083, %s1091
          %s1093 = sadd.s32 %s32, %s31
          %s1094 = smul.addr %s1093, 128
          %s1095 = scalar_lea.hbm %s13, %s1094
          %s1097 = sshll.u32 %s1086, 4
          %s1098 = int_to_ptr.vmem [resolvable:$true] %s1097
          %1100 = dma.vmem_to_hbm [thread:$0]  %s1098, 128, %s1095, %s1083
        $region83: #{tpu_custom_call.1} parent=71 // pred_fallthru
          _
      $region72: #{tpu_custom_call.1} parent=5 // pred_fallthru
        _
      %p1101 = scmp.le.s32.totalorder 2, %s22
      // Predicated region
      $region84: #{tpu_custom_call.1} parent=5 // pred_check
        %p1102 = pneg %p1101
      $region85: #{tpu_custom_call.1} parent=5 // pred_check_branch
        %1104 = sbr.rel (%p1102) target = $region87
      $region86: #{tpu_custom_call.1} parent=5 // pred_region
        %s1105 = ssub.s32 %s22, 2
        // Predicated region
        $region88: #{tpu_custom_call.1} parent=86 // pred_check
          %p1106 = pneg %p355
        $region89: #{tpu_custom_call.1} parent=86 // pred_check_branch
          %1108 = sbr.rel (%p1106) target = $region91
        $region90: #{tpu_custom_call.1} parent=86 // pred_region
          %s1109 = sand.u32 %s340, 1
          %s1110 = scalar_lea.sflag [#allocation4], %s1109
          %s1111 = sand.u32 %s340, 1
          %s1112 = smul.addr %s1111, 8
          %s1113 = scalar_lea.vmem [#allocation3], %s1112
          %1114 = dma.done %s1110, 128
        $region91: #{tpu_custom_call.1} parent=86 // pred_fallthru
          _
      $region87: #{tpu_custom_call.1} parent=5 // pred_fallthru
        _
    $region6: #{tpu_custom_call.1} parent=1 // loop_footer
      %s26 = sadd.s32 1, %s22
    $region7: #{tpu_custom_call.1} parent=1 // loop_footer_branch
      %21 = sbr.rel target = $region3
    $region8: #{tpu_custom_call.1} parent=1 // loop_exit
      _
    %1115 = vsyncpa [#allocation4], 1
    %s1116 = scalar_lea.sflag [#allocation4], 1
    %1117 = vsyncpa %s1116, 1

</llo_original>
